<compile_context>
chip_gen: v7x
topology: tpu7x:2x2x1
jax: 0.10.0
libtpu: 0.0.40
codegen_flags: <defaults>
</compile_context>

<pallas_src>
from functools import partial

import jax
import jax.numpy as jnp
from jax.experimental import pallas as pl
from jax.experimental.pallas import tpu as pltpu


def _swish(x):
    return x * jax.nn.sigmoid(x)


def _softplus(x):
    # numerically stable softplus
    return jnp.logaddexp(x, 0.0)


def _round_up(n, m):
    return ((n + m - 1) // m) * m


def ensemble_kernel(half, e_per,
                    maxlv_ref, minlv_ref, x_ref,
                    w0_ref, b0_ref, w1_ref, b1_ref,
                    w2_ref, b2_ref, w3_ref, b3_ref,
                    out_ref):
    # maxlv/minlv: (1, Dp) padded so that lane j in [half, D_out) carries the
    # bound for logvar channel j - half; values elsewhere are never selected.
    max_lv = maxlv_ref[...]
    min_lv = minlv_ref[...]
    dp = out_ref.shape[-1]

    lane = jax.lax.broadcasted_iota(jnp.int32, (1, dp), 1)
    is_mean = lane < half                      # (1, Dp), broadcasts over batch

    # Static unroll over the ensemble members handled by this grid step.
    for e in range(e_per):
        h = _swish(jnp.dot(x_ref[e], w0_ref[e],
                           preferred_element_type=jnp.float32) + b0_ref[e])
        h = _swish(jnp.dot(h, w1_ref[e],
                           preferred_element_type=jnp.float32) + b1_ref[e])
        h = _swish(jnp.dot(h, w2_ref[e],
                           preferred_element_type=jnp.float32) + b2_ref[e])
        out = jnp.dot(h, w3_ref[e],
                      preferred_element_type=jnp.float32) + b3_ref[e]

        # Softplus clamp computed full-width, then merged with the mean half
        # via a lane mask (avoids sub-128-lane slices / masked stores).
        lv = max_lv - _softplus(max_lv - out)
        lv = min_lv + _softplus(lv - min_lv)

        out_ref[e] = jnp.where(is_mean, out, lv)


def ensemble_forward(x, params):
    """x: [E, B, D_in] float32.  Returns (mean, logvar), each [E, B, out//2]."""
    E, B, D_in = x.shape
    w0, b0 = params["w0"], params["b0"]
    w1, b1 = params["w1"], params["b1"]
    w2, b2 = params["w2"], params["b2"]
    w3, b3 = params["w3"], params["b3"]
    mu, sigma = params["mu"], params["sigma"]
    max_lv, min_lv = params["max_logvar"], params["min_logvar"]

    H = w0.shape[-1]                 # 200
    D_out = w3.shape[-1]
    half = D_out // 2
    Hp = _round_up(H, 128)           # 256
    Dp = _round_up(D_out, 128)       # 128

    # --- fold input normalization into layer 0 ------------------------------
    # ((x - mu)/sigma) @ w0 + b0  ==  x @ (w0/sigma) + (b0 - (mu/sigma) @ w0)
    inv_sigma = 1.0 / sigma                                   # (1, D_in)
    w0f = w0 * inv_sigma[:, :, None]                          # (E, D_in, H)
    b0f = b0 - jnp.einsum("xd,edh->exh", mu * inv_sigma, w0)  # (E, 1, H)

    # --- zero-pad hidden/output widths to lane multiples --------------------
    w0p = jnp.pad(w0f, ((0, 0), (0, 0), (0, Hp - H)))
    b0p = jnp.pad(b0f, ((0, 0), (0, 0), (0, Hp - H)))
    w1p = jnp.pad(w1, ((0, 0), (0, Hp - H), (0, Hp - H)))
    b1p = jnp.pad(b1, ((0, 0), (0, 0), (0, Hp - H)))
    w2p = jnp.pad(w2, ((0, 0), (0, Hp - H), (0, Hp - H)))
    b2p = jnp.pad(b2, ((0, 0), (0, 0), (0, Hp - H)))
    w3p = jnp.pad(w3, ((0, 0), (0, Hp - H), (0, Dp - D_out)))
    b3p = jnp.pad(b3, ((0, 0), (0, 0), (0, Dp - D_out)))
    # place logvar bounds at the lanes where logvar lives ([half, D_out))
    max_full = jnp.pad(max_lv, ((0, 0), (half, Dp - D_out)))
    min_full = jnp.pad(min_lv, ((0, 0), (half, Dp - D_out)))

    # --- grid: 2 parallel shards if possible (uses both TCs on v7x), else 1 -
    n_shards = 2 if (E > 1 and E % 2 == 0) else 1
    E_per = E // n_shards

    def per_shard(shape):
        return pl.BlockSpec((E_per,) + shape, lambda s: (s, 0, 0))

    def shared(shape):
        return pl.BlockSpec(shape, lambda s: (0, 0))

    grid_spec = pltpu.PrefetchScalarGridSpec(
        num_scalar_prefetch=0,
        grid=(n_shards,),
        in_specs=[
            shared((1, Dp)),                      # max_logvar (padded)
            shared((1, Dp)),                      # min_logvar (padded)
            per_shard((B, D_in)),                 # x
            per_shard((D_in, Hp)), per_shard((1, Hp)),   # layer0 (norm folded)
            per_shard((Hp, Hp)),   per_shard((1, Hp)),   # layer1
            per_shard((Hp, Hp)),   per_shard((1, Hp)),   # layer2
            per_shard((Hp, Dp)),   per_shard((1, Dp)),   # layer3
        ],
        out_specs=per_shard((B, Dp)),             # [mean || logvar || pad]
    )

    out = pl.pallas_call(
        partial(ensemble_kernel, half, E_per),
        out_shape=jax.ShapeDtypeStruct((E, B, Dp), jnp.float32),
        grid_spec=grid_spec,
        compiler_params=pltpu.CompilerParams(
            dimension_semantics=("parallel",)),
    )(max_full, min_full, x,
      w0p, b0p, w1p, b1p, w2p, b2p, w3p, b3p)

    mean = out[:, :, :half]
    logvar = out[:, :, half:D_out]
    return mean, logvar


def init_params(key, ensemble_size, input_size, output_size):
    """Deterministic parameter init mirroring get_w_b (truncated normal /
    zero biases), plus non-trivial normalization stats and logvar bounds."""
    def get_w_b(key, e, d_in, d_out):
        std = 1.0 / (2.0 * jnp.sqrt(jnp.float32(d_in)))
        w = jax.random.truncated_normal(key, -2.0, 2.0, (e, d_in, d_out),
                                        jnp.float32) * std
        b = jnp.zeros((e, 1, d_out), jnp.float32)
        return w, b

    k0, k1, k2, k3, km, ks = jax.random.split(key, 6)
    w0, b0 = get_w_b(k0, ensemble_size, input_size, 200)
    w1, b1 = get_w_b(k1, ensemble_size, 200, 200)
    w2, b2 = get_w_b(k2, ensemble_size, 200, 200)
    w3, b3 = get_w_b(k3, ensemble_size, 200, output_size)

    # Non-trivial stats (as produced by get_input_stats); sigma kept away
    # from zero, which also removes the divide-by-zero hazard of the raw
    # PyTorch init (sigma = 0).
    mu = 0.1 * jax.random.normal(km, (1, input_size), jnp.float32)
    sigma = 0.5 + jax.random.uniform(ks, (1, input_size), jnp.float32)

    half = output_size // 2
    max_logvar = jnp.ones((1, half), jnp.float32) / 2.0
    min_logvar = -jnp.ones((1, half), jnp.float32) * 10.0

    return dict(w0=w0, b0=b0, w1=w1, b1=b1, w2=w2, b2=b2, w3=w3, b3=b3,
                mu=mu, sigma=sigma, max_logvar=max_logvar,
                min_logvar=min_logvar)


def ensemble_forward_ref(x, p):
    """Pure-JAX reference for correctness check (mirrors the PyTorch forward)."""
    h = (x - p["mu"]) / p["sigma"]
    h = _swish(jnp.einsum("ebi,eio->ebo", h, p["w0"]) + p["b0"])
    h = _swish(jnp.einsum("ebi,eio->ebo", h, p["w1"]) + p["b1"])
    h = _swish(jnp.einsum("ebi,eio->ebo", h, p["w2"]) + p["b2"])
    out = jnp.einsum("ebi,eio->ebo", h, p["w3"]) + p["b3"]
    half = out.shape[-1] // 2
    mean, logvar = out[:, :, :half], out[:, :, half:]
    logvar = p["max_logvar"] - _softplus(p["max_logvar"] - logvar)
    logvar = p["min_logvar"] + _softplus(logvar - p["min_logvar"])
    return mean, logvar


if __name__ == "__main__":
    ensemble_size = 4
    input_size = 32
    output_size = 8          # mean/logvar each output_size // 2 = 4
    batch = 8

    key = jax.random.PRNGKey(0)
    pkey, xkey = jax.random.split(key)
    params = init_params(pkey, ensemble_size, input_size, output_size)
    x = jax.random.normal(xkey, (ensemble_size, batch, input_size), jnp.float32)

    mean, logvar = jax.block_until_ready(ensemble_forward(x, params))
    mean_r, logvar_r = ensemble_forward_ref(x, params)

    assert jnp.allclose(mean, mean_r, atol=1e-4, rtol=1e-4)
    assert jnp.allclose(logvar, logvar_r, atol=1e-4, rtol=1e-4)
    print("KERNEL_OK")
</pallas_src>

<mosaic_0001>
module attributes {stable_mosaic.version = 11 : i64} {
  func.func @ensemble_kernel(%arg0: i32, %arg1: memref<1x128xf32, #tpu.memory_space<vmem>>, %arg2: memref<1x128xf32, #tpu.memory_space<vmem>>, %arg3: memref<2x8x32xf32, #tpu.memory_space<vmem>>, %arg4: memref<2x32x256xf32, #tpu.memory_space<vmem>>, %arg5: memref<2x1x256xf32, #tpu.memory_space<vmem>>, %arg6: memref<2x256x256xf32, #tpu.memory_space<vmem>>, %arg7: memref<2x1x256xf32, #tpu.memory_space<vmem>>, %arg8: memref<2x256x256xf32, #tpu.memory_space<vmem>>, %arg9: memref<2x1x256xf32, #tpu.memory_space<vmem>>, %arg10: memref<2x256x128xf32, #tpu.memory_space<vmem>>, %arg11: memref<2x1x128xf32, #tpu.memory_space<vmem>>, %arg12: memref<2x8x128xf32, #tpu.memory_space<vmem>>) attributes {dimension_semantics = [#tpu.dimension_semantics<parallel>], iteration_bounds = array<i64: 2>, scalar_prefetch = 0 : i64, scratch_operands = 0 : i64, tpu.core_type = #tpu.core_type<tc>, window_params = [{pipeline_mode = #tpu.pipeline_mode<synchronous>, transform_indices = @transform_0, window_bounds = array<i64: 1, 128>}, {pipeline_mode = #tpu.pipeline_mode<synchronous>, transform_indices = @transform_1, window_bounds = array<i64: 1, 128>}, {transform_indices = @transform_2, window_bounds = array<i64: 2, 8, 32>}, {transform_indices = @transform_3, window_bounds = array<i64: 2, 32, 256>}, {transform_indices = @transform_4, window_bounds = array<i64: 2, 1, 256>}, {transform_indices = @transform_5, window_bounds = array<i64: 2, 256, 256>}, {transform_indices = @transform_6, window_bounds = array<i64: 2, 1, 256>}, {transform_indices = @transform_7, window_bounds = array<i64: 2, 256, 256>}, {transform_indices = @transform_8, window_bounds = array<i64: 2, 1, 256>}, {transform_indices = @transform_9, window_bounds = array<i64: 2, 256, 128>}, {transform_indices = @transform_10, window_bounds = array<i64: 2, 1, 128>}, {transform_indices = @transform_11, window_bounds = array<i64: 2, 8, 128>}]} {
    %c0 = arith.constant 0 : index
    %c0_0 = arith.constant 0 : index
    %0 = vector.load %arg1[%c0, %c0_0] : memref<1x128xf32, #tpu.memory_space<vmem>>, vector<1x128xf32>
    %c0_1 = arith.constant 0 : index
    %c0_2 = arith.constant 0 : index
    %1 = vector.load %arg2[%c0_1, %c0_2] : memref<1x128xf32, #tpu.memory_space<vmem>>, vector<1x128xf32>
    %2 = tpu.iota {dimensions = array<i32: 1>} : vector<1x128xi32>
    %c4_i32 = arith.constant 4 : i32
    %3 = vector.broadcast %c4_i32 : i32 to vector<1x128xi32>
    %4 = arith.cmpi slt, %2, %3 : vector<1x128xi32>
    %c0_3 = arith.constant 0 : index
    %c0_4 = arith.constant 0 : index
    %c0_5 = arith.constant 0 : index
    %5 = vector.load %arg3[%c0_3, %c0_4, %c0_5] : memref<2x8x32xf32, #tpu.memory_space<vmem>>, vector<1x8x32xf32>
    %6 = vector.shape_cast %5 : vector<1x8x32xf32> to vector<8x32xf32>
    %c0_6 = arith.constant 0 : index
    %c0_7 = arith.constant 0 : index
    %c0_8 = arith.constant 0 : index
    %7 = vector.load %arg4[%c0_6, %c0_7, %c0_8] : memref<2x32x256xf32, #tpu.memory_space<vmem>>, vector<1x32x256xf32>
    %8 = vector.shape_cast %7 : vector<1x32x256xf32> to vector<32x256xf32>
    %cst = arith.constant dense<0.000000e+00> : vector<8x256xf32>
    %9 = tpu.matmul %6, %8, %cst {dimension_numbers = #tpu.dot_dimension_numbers<[1], [0], [0], [1], [0, 0, 1, 1], [], []>} : vector<8x32xf32>, vector<32x256xf32>, vector<8x256xf32> -> vector<8x256xf32>
    %c0_9 = arith.constant 0 : index
    %c0_10 = arith.constant 0 : index
    %c0_11 = arith.constant 0 : index
    %10 = vector.load %arg5[%c0_9, %c0_10, %c0_11] : memref<2x1x256xf32, #tpu.memory_space<vmem>>, vector<1x1x256xf32>
    %11 = vector.shape_cast %10 : vector<1x1x256xf32> to vector<1x256xf32>
    %12 = vector.broadcast %11 : vector<1x256xf32> to vector<8x256xf32>
    %13 = arith.addf %9, %12 : vector<8x256xf32>
    %14 = arith.negf %13 : vector<8x256xf32>
    %15 = math.exp %14 : vector<8x256xf32>
    %cst_12 = arith.constant 1.000000e+00 : f32
    %16 = vector.broadcast %cst_12 : f32 to vector<8x256xf32>
    %17 = arith.addf %16, %15 : vector<8x256xf32>
    %18 = arith.divf %16, %17 : vector<8x256xf32>
    %19 = arith.mulf %13, %18 : vector<8x256xf32>
    %c0_13 = arith.constant 0 : index
    %c0_14 = arith.constant 0 : index
    %c0_15 = arith.constant 0 : index
    %20 = vector.load %arg6[%c0_13, %c0_14, %c0_15] : memref<2x256x256xf32, #tpu.memory_space<vmem>>, vector<1x256x256xf32>
    %21 = vector.shape_cast %20 : vector<1x256x256xf32> to vector<256x256xf32>
    %cst_16 = arith.constant dense<0.000000e+00> : vector<8x256xf32>
    %22 = tpu.matmul %19, %21, %cst_16 {dimension_numbers = #tpu.dot_dimension_numbers<[1], [0], [0], [1], [0, 0, 1, 1], [], []>} : vector<8x256xf32>, vector<256x256xf32>, vector<8x256xf32> -> vector<8x256xf32>
    %c0_17 = arith.constant 0 : index
    %c0_18 = arith.constant 0 : index
    %c0_19 = arith.constant 0 : index
    %23 = vector.load %arg7[%c0_17, %c0_18, %c0_19] : memref<2x1x256xf32, #tpu.memory_space<vmem>>, vector<1x1x256xf32>
    %24 = vector.shape_cast %23 : vector<1x1x256xf32> to vector<1x256xf32>
    %25 = vector.broadcast %24 : vector<1x256xf32> to vector<8x256xf32>
    %26 = arith.addf %22, %25 : vector<8x256xf32>
    %27 = arith.negf %26 : vector<8x256xf32>
    %28 = math.exp %27 : vector<8x256xf32>
    %cst_20 = arith.constant 1.000000e+00 : f32
    %29 = vector.broadcast %cst_20 : f32 to vector<8x256xf32>
    %30 = arith.addf %29, %28 : vector<8x256xf32>
    %31 = arith.divf %29, %30 : vector<8x256xf32>
    %32 = arith.mulf %26, %31 : vector<8x256xf32>
    %c0_21 = arith.constant 0 : index
    %c0_22 = arith.constant 0 : index
    %c0_23 = arith.constant 0 : index
    %33 = vector.load %arg8[%c0_21, %c0_22, %c0_23] : memref<2x256x256xf32, #tpu.memory_space<vmem>>, vector<1x256x256xf32>
    %34 = vector.shape_cast %33 : vector<1x256x256xf32> to vector<256x256xf32>
    %cst_24 = arith.constant dense<0.000000e+00> : vector<8x256xf32>
    %35 = tpu.matmul %32, %34, %cst_24 {dimension_numbers = #tpu.dot_dimension_numbers<[1], [0], [0], [1], [0, 0, 1, 1], [], []>} : vector<8x256xf32>, vector<256x256xf32>, vector<8x256xf32> -> vector<8x256xf32>
    %c0_25 = arith.constant 0 : index
    %c0_26 = arith.constant 0 : index
    %c0_27 = arith.constant 0 : index
    %36 = vector.load %arg9[%c0_25, %c0_26, %c0_27] : memref<2x1x256xf32, #tpu.memory_space<vmem>>, vector<1x1x256xf32>
    %37 = vector.shape_cast %36 : vector<1x1x256xf32> to vector<1x256xf32>
    %38 = vector.broadcast %37 : vector<1x256xf32> to vector<8x256xf32>
    %39 = arith.addf %35, %38 : vector<8x256xf32>
    %40 = arith.negf %39 : vector<8x256xf32>
    %41 = math.exp %40 : vector<8x256xf32>
    %cst_28 = arith.constant 1.000000e+00 : f32
    %42 = vector.broadcast %cst_28 : f32 to vector<8x256xf32>
    %43 = arith.addf %42, %41 : vector<8x256xf32>
    %44 = arith.divf %42, %43 : vector<8x256xf32>
    %45 = arith.mulf %39, %44 : vector<8x256xf32>
    %c0_29 = arith.constant 0 : index
    %c0_30 = arith.constant 0 : index
    %c0_31 = arith.constant 0 : index
    %46 = vector.load %arg10[%c0_29, %c0_30, %c0_31] : memref<2x256x128xf32, #tpu.memory_space<vmem>>, vector<1x256x128xf32>
    %47 = vector.shape_cast %46 : vector<1x256x128xf32> to vector<256x128xf32>
    %cst_32 = arith.constant dense<0.000000e+00> : vector<8x128xf32>
    %48 = tpu.matmul %45, %47, %cst_32 {dimension_numbers = #tpu.dot_dimension_numbers<[1], [0], [0], [1], [0, 0, 1, 1], [], []>} : vector<8x256xf32>, vector<256x128xf32>, vector<8x128xf32> -> vector<8x128xf32>
    %c0_33 = arith.constant 0 : index
    %c0_34 = arith.constant 0 : index
    %c0_35 = arith.constant 0 : index
    %49 = vector.load %arg11[%c0_33, %c0_34, %c0_35] : memref<2x1x128xf32, #tpu.memory_space<vmem>>, vector<1x1x128xf32>
    %50 = vector.shape_cast %49 : vector<1x1x128xf32> to vector<1x128xf32>
    %51 = vector.broadcast %50 : vector<1x128xf32> to vector<8x128xf32>
    %52 = arith.addf %48, %51 : vector<8x128xf32>
    %53 = vector.broadcast %0 : vector<1x128xf32> to vector<8x128xf32>
    %54 = arith.subf %53, %52 : vector<8x128xf32>
    %cst_36 = arith.constant 0.000000e+00 : f32
    %55 = vector.broadcast %cst_36 : f32 to vector<8x128xf32>
    %56 = arith.maximumf %54, %55 : vector<8x128xf32>
    %57 = vector.broadcast %cst_36 : f32 to vector<8x128xf32>
    %58 = arith.subf %54, %57 : vector<8x128xf32>
    %59 = arith.cmpf one, %58, %58 : vector<8x128xf32>
    %60 = vector.broadcast %cst_36 : f32 to vector<8x128xf32>
    %61 = arith.addf %54, %60 : vector<8x128xf32>
    %62 = math.absf %58 : vector<8x128xf32>
    %cst_37 = arith.constant 0.000000e+00 : f32
    %63 = vector.broadcast %cst_37 : f32 to vector<8x128xf32>
    %64 = arith.subf %63, %62 : vector<8x128xf32>
    %65 = math.exp %64 : vector<8x128xf32>
    %66 = math.log1p %65 : vector<8x128xf32>
    %67 = arith.addf %56, %66 : vector<8x128xf32>
    %68 = arith.select %59, %61, %67 : vector<8x128xi1>, vector<8x128xf32>
    %69 = vector.broadcast %0 : vector<1x128xf32> to vector<8x128xf32>
    %70 = arith.subf %69, %68 : vector<8x128xf32>
    %71 = vector.broadcast %1 : vector<1x128xf32> to vector<8x128xf32>
    %72 = arith.subf %70, %71 : vector<8x128xf32>
    %cst_38 = arith.constant 0.000000e+00 : f32
    %73 = vector.broadcast %cst_38 : f32 to vector<8x128xf32>
    %74 = arith.maximumf %72, %73 : vector<8x128xf32>
    %75 = vector.broadcast %cst_38 : f32 to vector<8x128xf32>
    %76 = arith.subf %72, %75 : vector<8x128xf32>
    %77 = arith.cmpf one, %76, %76 : vector<8x128xf32>
    %78 = vector.broadcast %cst_38 : f32 to vector<8x128xf32>
    %79 = arith.addf %72, %78 : vector<8x128xf32>
    %80 = math.absf %76 : vector<8x128xf32>
    %cst_39 = arith.constant 0.000000e+00 : f32
    %81 = vector.broadcast %cst_39 : f32 to vector<8x128xf32>
    %82 = arith.subf %81, %80 : vector<8x128xf32>
    %83 = math.exp %82 : vector<8x128xf32>
    %84 = math.log1p %83 : vector<8x128xf32>
    %85 = arith.addf %74, %84 : vector<8x128xf32>
    %86 = arith.select %77, %79, %85 : vector<8x128xi1>, vector<8x128xf32>
    %87 = vector.broadcast %1 : vector<1x128xf32> to vector<8x128xf32>
    %88 = arith.addf %87, %86 : vector<8x128xf32>
    %89 = vector.shape_cast %4 : vector<1x128xi1> to vector<1x128xi1>
    %90 = vector.broadcast %89 : vector<1x128xi1> to vector<8x128xi1>
    %91 = arith.select %90, %52, %88 : vector<8x128xi1>, vector<8x128xf32>
    %c0_40 = arith.constant 0 : index
    %c0_41 = arith.constant 0 : index
    %c0_42 = arith.constant 0 : index
    %92 = vector.load %arg12[%c0_40, %c0_41, %c0_42] : memref<2x8x128xf32, #tpu.memory_space<vmem>>, vector<1x8x128xf32>
    %93 = vector.shape_cast %92 : vector<1x8x128xf32> to vector<8x128xf32>
    %94 = vector.shape_cast %91 : vector<8x128xf32> to vector<1x8x128xf32>
    tpu.vector_store %arg12[%c0_40, %c0_41, %c0_42], %94 {strides = array<i32>} : memref<2x8x128xf32, #tpu.memory_space<vmem>>, vector<1x8x128xf32>,
    %c1 = arith.constant 1 : index
    %c0_43 = arith.constant 0 : index
    %c0_44 = arith.constant 0 : index
    %95 = vector.load %arg3[%c1, %c0_43, %c0_44] : memref<2x8x32xf32, #tpu.memory_space<vmem>>, vector<1x8x32xf32>
    %96 = vector.shape_cast %95 : vector<1x8x32xf32> to vector<8x32xf32>
    %c1_45 = arith.constant 1 : index
    %c0_46 = arith.constant 0 : index
    %c0_47 = arith.constant 0 : index
    %97 = vector.load %arg4[%c1_45, %c0_46, %c0_47] : memref<2x32x256xf32, #tpu.memory_space<vmem>>, vector<1x32x256xf32>
    %98 = vector.shape_cast %97 : vector<1x32x256xf32> to vector<32x256xf32>
    %cst_48 = arith.constant dense<0.000000e+00> : vector<8x256xf32>
    %99 = tpu.matmul %96, %98, %cst_48 {dimension_numbers = #tpu.dot_dimension_numbers<[1], [0], [0], [1], [0, 0, 1, 1], [], []>} : vector<8x32xf32>, vector<32x256xf32>, vector<8x256xf32> -> vector<8x256xf32>
    %c1_49 = arith.constant 1 : index
    %c0_50 = arith.constant 0 : index
    %c0_51 = arith.constant 0 : index
    %100 = vector.load %arg5[%c1_49, %c0_50, %c0_51] : memref<2x1x256xf32, #tpu.memory_space<vmem>>, vector<1x1x256xf32>
    %101 = vector.shape_cast %100 : vector<1x1x256xf32> to vector<1x256xf32>
    %102 = vector.broadcast %101 : vector<1x256xf32> to vector<8x256xf32>
    %103 = arith.addf %99, %102 : vector<8x256xf32>
    %104 = arith.negf %103 : vector<8x256xf32>
    %105 = math.exp %104 : vector<8x256xf32>
    %cst_52 = arith.constant 1.000000e+00 : f32
    %106 = vector.broadcast %cst_52 : f32 to vector<8x256xf32>
    %107 = arith.addf %106, %105 : vector<8x256xf32>
    %108 = arith.divf %106, %107 : vector<8x256xf32>
    %109 = arith.mulf %103, %108 : vector<8x256xf32>
    %c1_53 = arith.constant 1 : index
    %c0_54 = arith.constant 0 : index
    %c0_55 = arith.constant 0 : index
    %110 = vector.load %arg6[%c1_53, %c0_54, %c0_55] : memref<2x256x256xf32, #tpu.memory_space<vmem>>, vector<1x256x256xf32>
    %111 = vector.shape_cast %110 : vector<1x256x256xf32> to vector<256x256xf32>
    %cst_56 = arith.constant dense<0.000000e+00> : vector<8x256xf32>
    %112 = tpu.matmul %109, %111, %cst_56 {dimension_numbers = #tpu.dot_dimension_numbers<[1], [0], [0], [1], [0, 0, 1, 1], [], []>} : vector<8x256xf32>, vector<256x256xf32>, vector<8x256xf32> -> vector<8x256xf32>
    %c1_57 = arith.constant 1 : index
    %c0_58 = arith.constant 0 : index
    %c0_59 = arith.constant 0 : index
    %113 = vector.load %arg7[%c1_57, %c0_58, %c0_59] : memref<2x1x256xf32, #tpu.memory_space<vmem>>, vector<1x1x256xf32>
    %114 = vector.shape_cast %113 : vector<1x1x256xf32> to vector<1x256xf32>
    %115 = vector.broadcast %114 : vector<1x256xf32> to vector<8x256xf32>
    %116 = arith.addf %112, %115 : vector<8x256xf32>
    %117 = arith.negf %116 : vector<8x256xf32>
    %118 = math.exp %117 : vector<8x256xf32>
    %cst_60 = arith.constant 1.000000e+00 : f32
    %119 = vector.broadcast %cst_60 : f32 to vector<8x256xf32>
    %120 = arith.addf %119, %118 : vector<8x256xf32>
    %121 = arith.divf %119, %120 : vector<8x256xf32>
    %122 = arith.mulf %116, %121 : vector<8x256xf32>
    %c1_61 = arith.constant 1 : index
    %c0_62 = arith.constant 0 : index
    %c0_63 = arith.constant 0 : index
    %123 = vector.load %arg8[%c1_61, %c0_62, %c0_63] : memref<2x256x256xf32, #tpu.memory_space<vmem>>, vector<1x256x256xf32>
    %124 = vector.shape_cast %123 : vector<1x256x256xf32> to vector<256x256xf32>
    %cst_64 = arith.constant dense<0.000000e+00> : vector<8x256xf32>
    %125 = tpu.matmul %122, %124, %cst_64 {dimension_numbers = #tpu.dot_dimension_numbers<[1], [0], [0], [1], [0, 0, 1, 1], [], []>} : vector<8x256xf32>, vector<256x256xf32>, vector<8x256xf32> -> vector<8x256xf32>
    %c1_65 = arith.constant 1 : index
    %c0_66 = arith.constant 0 : index
    %c0_67 = arith.constant 0 : index
    %126 = vector.load %arg9[%c1_65, %c0_66, %c0_67] : memref<2x1x256xf32, #tpu.memory_space<vmem>>, vector<1x1x256xf32>
    %127 = vector.shape_cast %126 : vector<1x1x256xf32> to vector<1x256xf32>
    %128 = vector.broadcast %127 : vector<1x256xf32> to vector<8x256xf32>
    %129 = arith.addf %125, %128 : vector<8x256xf32>
    %130 = arith.negf %129 : vector<8x256xf32>
    %131 = math.exp %130 : vector<8x256xf32>
    %cst_68 = arith.constant 1.000000e+00 : f32
    %132 = vector.broadcast %cst_68 : f32 to vector<8x256xf32>
    %133 = arith.addf %132, %131 : vector<8x256xf32>
    %134 = arith.divf %132, %133 : vector<8x256xf32>
    %135 = arith.mulf %129, %134 : vector<8x256xf32>
    %c1_69 = arith.constant 1 : index
    %c0_70 = arith.constant 0 : index
    %c0_71 = arith.constant 0 : index
    %136 = vector.load %arg10[%c1_69, %c0_70, %c0_71] : memref<2x256x128xf32, #tpu.memory_space<vmem>>, vector<1x256x128xf32>
    %137 = vector.shape_cast %136 : vector<1x256x128xf32> to vector<256x128xf32>
    %cst_72 = arith.constant dense<0.000000e+00> : vector<8x128xf32>
    %138 = tpu.matmul %135, %137, %cst_72 {dimension_numbers = #tpu.dot_dimension_numbers<[1], [0], [0], [1], [0, 0, 1, 1], [], []>} : vector<8x256xf32>, vector<256x128xf32>, vector<8x128xf32> -> vector<8x128xf32>
    %c1_73 = arith.constant 1 : index
    %c0_74 = arith.constant 0 : index
    %c0_75 = arith.constant 0 : index
    %139 = vector.load %arg11[%c1_73, %c0_74, %c0_75] : memref<2x1x128xf32, #tpu.memory_space<vmem>>, vector<1x1x128xf32>
    %140 = vector.shape_cast %139 : vector<1x1x128xf32> to vector<1x128xf32>
    %141 = vector.broadcast %140 : vector<1x128xf32> to vector<8x128xf32>
    %142 = arith.addf %138, %141 : vector<8x128xf32>
    %143 = vector.broadcast %0 : vector<1x128xf32> to vector<8x128xf32>
    %144 = arith.subf %143, %142 : vector<8x128xf32>
    %cst_76 = arith.constant 0.000000e+00 : f32
    %145 = vector.broadcast %cst_76 : f32 to vector<8x128xf32>
    %146 = arith.maximumf %144, %145 : vector<8x128xf32>
    %147 = vector.broadcast %cst_76 : f32 to vector<8x128xf32>
    %148 = arith.subf %144, %147 : vector<8x128xf32>
    %149 = arith.cmpf one, %148, %148 : vector<8x128xf32>
    %150 = vector.broadcast %cst_76 : f32 to vector<8x128xf32>
    %151 = arith.addf %144, %150 : vector<8x128xf32>
    %152 = math.absf %148 : vector<8x128xf32>
    %cst_77 = arith.constant 0.000000e+00 : f32
    %153 = vector.broadcast %cst_77 : f32 to vector<8x128xf32>
    %154 = arith.subf %153, %152 : vector<8x128xf32>
    %155 = math.exp %154 : vector<8x128xf32>
    %156 = math.log1p %155 : vector<8x128xf32>
    %157 = arith.addf %146, %156 : vector<8x128xf32>
    %158 = arith.select %149, %151, %157 : vector<8x128xi1>, vector<8x128xf32>
    %159 = vector.broadcast %0 : vector<1x128xf32> to vector<8x128xf32>
    %160 = arith.subf %159, %158 : vector<8x128xf32>
    %161 = vector.broadcast %1 : vector<1x128xf32> to vector<8x128xf32>
    %162 = arith.subf %160, %161 : vector<8x128xf32>
    %cst_78 = arith.constant 0.000000e+00 : f32
    %163 = vector.broadcast %cst_78 : f32 to vector<8x128xf32>
    %164 = arith.maximumf %162, %163 : vector<8x128xf32>
    %165 = vector.broadcast %cst_78 : f32 to vector<8x128xf32>
    %166 = arith.subf %162, %165 : vector<8x128xf32>
    %167 = arith.cmpf one, %166, %166 : vector<8x128xf32>
    %168 = vector.broadcast %cst_78 : f32 to vector<8x128xf32>
    %169 = arith.addf %162, %168 : vector<8x128xf32>
    %170 = math.absf %166 : vector<8x128xf32>
    %cst_79 = arith.constant 0.000000e+00 : f32
    %171 = vector.broadcast %cst_79 : f32 to vector<8x128xf32>
    %172 = arith.subf %171, %170 : vector<8x128xf32>
    %173 = math.exp %172 : vector<8x128xf32>
    %174 = math.log1p %173 : vector<8x128xf32>
    %175 = arith.addf %164, %174 : vector<8x128xf32>
    %176 = arith.select %167, %169, %175 : vector<8x128xi1>, vector<8x128xf32>
    %177 = vector.broadcast %1 : vector<1x128xf32> to vector<8x128xf32>
    %178 = arith.addf %177, %176 : vector<8x128xf32>
    %179 = vector.shape_cast %4 : vector<1x128xi1> to vector<1x128xi1>
    %180 = vector.broadcast %179 : vector<1x128xi1> to vector<8x128xi1>
    %181 = arith.select %180, %142, %178 : vector<8x128xi1>, vector<8x128xf32>
    %c1_80 = arith.constant 1 : index
    %c0_81 = arith.constant 0 : index
    %c0_82 = arith.constant 0 : index
    %182 = vector.load %arg12[%c1_80, %c0_81, %c0_82] : memref<2x8x128xf32, #tpu.memory_space<vmem>>, vector<1x8x128xf32>
    %183 = vector.shape_cast %182 : vector<1x8x128xf32> to vector<8x128xf32>
    %184 = vector.shape_cast %181 : vector<8x128xf32> to vector<1x8x128xf32>
    tpu.vector_store %arg12[%c1_80, %c0_81, %c0_82], %184 {strides = array<i32>} : memref<2x8x128xf32, #tpu.memory_space<vmem>>, vector<1x8x128xf32>,
    return
  }
  func.func @transform_0(%arg0: i32) -> (i32, i32) {
    %c0_i32 = arith.constant 0 : i32
    %c0_i32_0 = arith.constant 0 : i32
    %c0_i32_1 = arith.constant 0 : i32
    return %c0_i32, %c0_i32_0 : i32, i32
  }
  func.func @transform_1(%arg0: i32) -> (i32, i32) {
    %c0_i32 = arith.constant 0 : i32
    %c0_i32_0 = arith.constant 0 : i32
    %c0_i32_1 = arith.constant 0 : i32
    return %c0_i32, %c0_i32_0 : i32, i32
  }
  func.func @transform_2(%arg0: i32) -> (i32, i32, i32) {
    %c0_i32 = arith.constant 0 : i32
    %c0_i32_0 = arith.constant 0 : i32
    %c0_i32_1 = arith.constant 0 : i32
    return %arg0, %c0_i32, %c0_i32_0 : i32, i32, i32
  }
  func.func @transform_3(%arg0: i32) -> (i32, i32, i32) {
    %c0_i32 = arith.constant 0 : i32
    %c0_i32_0 = arith.constant 0 : i32
    %c0_i32_1 = arith.constant 0 : i32
    return %arg0, %c0_i32, %c0_i32_0 : i32, i32, i32
  }
  func.func @transform_4(%arg0: i32) -> (i32, i32, i32) {
    %c0_i32 = arith.constant 0 : i32
    %c0_i32_0 = arith.constant 0 : i32
    %c0_i32_1 = arith.constant 0 : i32
    return %arg0, %c0_i32, %c0_i32_0 : i32, i32, i32
  }
  func.func @transform_5(%arg0: i32) -> (i32, i32, i32) {
    %c0_i32 = arith.constant 0 : i32
    %c0_i32_0 = arith.constant 0 : i32
    %c0_i32_1 = arith.constant 0 : i32
    return %arg0, %c0_i32, %c0_i32_0 : i32, i32, i32
  }
  func.func @transform_6(%arg0: i32) -> (i32, i32, i32) {
    %c0_i32 = arith.constant 0 : i32
    %c0_i32_0 = arith.constant 0 : i32
    %c0_i32_1 = arith.constant 0 : i32
    return %arg0, %c0_i32, %c0_i32_0 : i32, i32, i32
  }
  func.func @transform_7(%arg0: i32) -> (i32, i32, i32) {
    %c0_i32 = arith.constant 0 : i32
    %c0_i32_0 = arith.constant 0 : i32
    %c0_i32_1 = arith.constant 0 : i32
    return %arg0, %c0_i32, %c0_i32_0 : i32, i32, i32
  }
  func.func @transform_8(%arg0: i32) -> (i32, i32, i32) {
    %c0_i32 = arith.constant 0 : i32
    %c0_i32_0 = arith.constant 0 : i32
    %c0_i32_1 = arith.constant 0 : i32
    return %arg0, %c0_i32, %c0_i32_0 : i32, i32, i32
  }
  func.func @transform_9(%arg0: i32) -> (i32, i32, i32) {
    %c0_i32 = arith.constant 0 : i32
    %c0_i32_0 = arith.constant 0 : i32
    %c0_i32_1 = arith.constant 0 : i32
    return %arg0, %c0_i32, %c0_i32_0 : i32, i32, i32
  }
  func.func @transform_10(%arg0: i32) -> (i32, i32, i32) {
    %c0_i32 = arith.constant 0 : i32
    %c0_i32_0 = arith.constant 0 : i32
    %c0_i32_1 = arith.constant 0 : i32
    return %arg0, %c0_i32, %c0_i32_0 : i32, i32, i32
  }
  func.func @transform_11(%arg0: i32) -> (i32, i32, i32) {
    %c0_i32 = arith.constant 0 : i32
    %c0_i32_0 = arith.constant 0 : i32
    %c0_i32_1 = arith.constant 0 : i32
    return %arg0, %c0_i32, %c0_i32_0 : i32, i32, i32
  }
}

</mosaic_0001>

<llo_original>
// kernel: tpu_custom_call.1
$region0: #{tpu_custom_call.1}
  #allocation0 [shape = 'u32[]', space=smem, size = 0x4, offset = 0x4, fixed_abs, tag = 'smem constant byte address 0x4 - core index']
  #allocation1 [shape = 'u32[144,128]{1,0:T(1,128)}', space=vmem, size = 0x12000, scoped, tag = 'internal scratch']
  %s0 = inlined_call_operand.hbm [shape: f32[1,128], index: 0, kind: input, shape index: {}]
  %s1 = inlined_call_operand.vmem [shape: f32[1,128], index: 1, kind: input, shape index: {}]
  %s2 = inlined_call_operand.hbm [shape: f32[4,8,32], index: 2, kind: input, shape index: {}]
  %s3 = inlined_call_operand.hbm [shape: f32[4,32,256], index: 3, kind: input, shape index: {}]
  %s4 = inlined_call_operand.vmem [shape: f32[4,1,256], index: 4, kind: input, shape index: {}]
  %s5 = inlined_call_operand.hbm [shape: f32[4,256,256], index: 5, kind: input, shape index: {}]
  %s6 = inlined_call_operand.vmem [shape: f32[4,1,256], index: 6, kind: input, shape index: {}]
  %s7 = inlined_call_operand.hbm [shape: f32[4,256,256], index: 7, kind: input, shape index: {}]
  %s8 = inlined_call_operand.vmem [shape: f32[4,1,256], index: 8, kind: input, shape index: {}]
  %s9 = inlined_call_operand.hbm [shape: f32[4,256,128], index: 9, kind: input, shape index: {}]
  %s10 = inlined_call_operand.vmem [shape: f32[4,1,128], index: 10, kind: input, shape index: {}]
  %s11 = inlined_call_operand.hbm [shape: f32[4,8,128], index: 11, kind: output, shape index: {}]
  %s12 = sld [smem:[#allocation0]]
  $region101: #{tpu_custom_call.1} parent=0
    _
  %s14 = ssub.s32 1, %s12
  %s15 = scalar_select 0, %s14, %s12
  $region1: #{tpu_custom_call.1} parent=0
    #allocation2 [shape = 'u8[512]{0}', space=vmem, size = 0x400, scoped, tag = 'input window, operand 0, single buffered']
    #allocation3 [shape = 's32[2]{0}', space=sflag, size = 0x8, scoped, tag = 'scoped memory for tpu_custom_call.1']
    #allocation4 [shape = 's32[2]{0}', space=sflag, size = 0x8, scoped, tag = 'scoped memory for tpu_custom_call.1']
    #allocation5 [shape = 'u8[16384]{0}', space=vmem, size = 0x4000, scoped, tag = 'input window, operand 2']
    #allocation6 [shape = 's32[2]{0}', space=sflag, size = 0x8, scoped, tag = 'scoped memory for tpu_custom_call.1']
    #allocation7 [shape = 'u8[131072]{0}', space=vmem, size = 0x20000, scoped, tag = 'input window, operand 3']
    #allocation8 [shape = 'u8[1048576]{0}', space=vmem, size = 0x100000, scoped, tag = 'input window, operand 5']
    #allocation9 [shape = 's32[2]{0}', space=sflag, size = 0x8, scoped, tag = 'scoped memory for tpu_custom_call.1']
    #allocation10 [shape = 'u8[1048576]{0}', space=vmem, size = 0x100000, scoped, tag = 'input window, operand 7']
    #allocation11 [shape = 'u8[524288]{0}', space=vmem, size = 0x80000, scoped, tag = 'input window, operand 9']
    #allocation12 [shape = 's32[2]{0}', space=sflag, size = 0x8, scoped, tag = 'scoped memory for tpu_custom_call.1']
    #allocation13 [shape = 'u8[16384]{0}', space=vmem, size = 0x4000, scoped, tag = 'output window, operand 0']
    %16 = vsyncpa [#allocation3], 0
    %17 = vsyncpa [#allocation6], 0
    %s18 = scalar_lea.sflag [#allocation6], 1
    %19 = vsyncpa %s18, 0
    %20 = vsyncpa [#allocation9], 0
    %s21 = scalar_lea.sflag [#allocation9], 1
    %22 = vsyncpa %s21, 0
    %23 = vsyncpa [#allocation12], 0
    %s24 = scalar_lea.sflag [#allocation12], 1
    %25 = vsyncpa %s24, 0
    %26 = vsyncpa [#allocation4], 0
    %s27 = scalar_lea.sflag [#allocation4], 1
    %28 = vsyncpa %s27, 0
    loop: start=0, step=1, limit=4
    $region2: #{tpu_custom_call.1} parent=1 // loop_pre_header
      _
    $region3: #{tpu_custom_call.1} parent=1 // loop_header
      %s30 = sphi 0, %s34
      %p31 = scmp.ge.s32.totalorder %s30, 4
      %s38 = sphi 0, %s38
      %s40 = sphi 0, %s38
      %s41 = sphi 0, %s40
      %s55 = sphi 0, %s41
      %s59 = sphi 0, %s59
      %s61 = sphi 0, %s59
      %s62 = sphi 0, %s61
      %s76 = sphi 0, %s62
      %s82 = sphi 0, %s84
      %s85 = sphi 0, %s82
      %s86 = sphi 0, %s85
      %s102 = sphi 0, %s86
      %s108 = sphi 0, %s110
      %s111 = sphi 0, %s108
      %s112 = sphi 0, %s111
      %s128 = sphi 0, %s112
      %s134 = sphi 0, %s136
      %s137 = sphi 0, %s134
      %s138 = sphi 0, %s137
      %s154 = sphi 0, %s138
      %s160 = sphi 0, %s162
      %s163 = sphi 0, %s160
      %s164 = sphi 0, %s163
      %s180 = sphi 0, %s164
      %s186 = sphi 0, %s188
      %s189 = sphi 0, %s186
      %s190 = sphi 0, %s189
      %s206 = sphi 0, %s190
      %s212 = sphi 0, %s214
      %s215 = sphi 0, %s212
      %s216 = sphi 0, %s215
      %s232 = sphi 0, %s216
      %s238 = sphi 0, %s240
      %s241 = sphi 0, %s238
      %s242 = sphi 0, %s241
      %s258 = sphi 0, %s242
      %s264 = sphi 0, %s266
      %s267 = sphi 0, %s264
      %s268 = sphi 0, %s267
      %s284 = sphi 0, %s268
      %s290 = sphi 0, %s292
      %s293 = sphi 0, %s290
      %s294 = sphi 0, %s293
      %s310 = sphi 0, %s294
      %s316 = sphi 0, %s318
      %s319 = sphi 0, %s316
      %s320 = sphi 0, %s319
      %s336 = sphi 0, %s320
    $region4: #{tpu_custom_call.1} parent=1 // loop_header_branch
      %33 = sbr.rel (%p31) target = $region8
    $region5: #{tpu_custom_call.1} parent=1 // loop_body
      %s35 = ssub.s32 %s30, 1
      %s36 = ssub.s32 %s30, 2
      %s37 = sadd.s32 %s30, 1
      %s39 = sadd.s32 %s38, 1
      %p42 = scmp.eq.s32.totalorder %s30, 1
      %p43 = scmp.ne.s32.totalorder %s38, %s40
      %p44 = scmp.eq.s32.totalorder %s30, 0
      %p45 = por %p43, %p44
      %p46 = scmp.ne.s32.totalorder %s38, %s40
      %p47 = scmp.eq.s32.totalorder %s35, 1
      %p48 = por %p46, %p47
      %p49 = scmp.ne.s32.totalorder %s40, %s41
      %p50 = scmp.eq.s32.totalorder %s35, 0
      %p51 = por %p49, %p50
      %p52 = scmp.ne.s32.totalorder %s40, %s41
      %p53 = scmp.eq.s32.totalorder %s36, 1
      %p54 = por %p52, %p53
      %p56 = scmp.ne.s32.totalorder %s41, %s55
      %p57 = scmp.eq.s32.totalorder %s36, 0
      %p58 = por %p56, %p57
      %s60 = sadd.s32 %s59, 1
      %p63 = scmp.eq.s32.totalorder %s30, 1
      %p64 = scmp.ne.s32.totalorder %s59, %s61
      %p65 = scmp.eq.s32.totalorder %s30, 0
      %p66 = por %p64, %p65
      %p67 = scmp.ne.s32.totalorder %s59, %s61
      %p68 = scmp.eq.s32.totalorder %s35, 1
      %p69 = por %p67, %p68
      %p70 = scmp.ne.s32.totalorder %s61, %s62
      %p71 = scmp.eq.s32.totalorder %s35, 0
      %p72 = por %p70, %p71
      %p73 = scmp.ne.s32.totalorder %s61, %s62
      %p74 = scmp.eq.s32.totalorder %s36, 1
      %p75 = por %p73, %p74
      %p77 = scmp.ne.s32.totalorder %s62, %s76
      %p78 = scmp.eq.s32.totalorder %s36, 0
      %p79 = por %p77, %p78
      %s80 = ssub.s32 %s30, %s37
      %p81 = scmp.eq.s32.totalorder %s80, 0
      %s83 = sadd.s32 %s82, 1
      %s84 = scalar_select %p81, %s82, %s83
      %p87 = pneg %p81
      %p88 = scmp.eq.s32.totalorder %s30, 1
      %p89 = por %p87, %p88
      %p90 = scmp.ne.s32.totalorder %s82, %s85
      %p91 = scmp.eq.s32.totalorder %s30, 0
      %p92 = por %p90, %p91
      %p93 = scmp.ne.s32.totalorder %s82, %s85
      %p94 = scmp.eq.s32.totalorder %s35, 1
      %p95 = por %p93, %p94
      %p96 = scmp.ne.s32.totalorder %s85, %s86
      %p97 = scmp.eq.s32.totalorder %s35, 0
      %p98 = por %p96, %p97
      %p99 = scmp.ne.s32.totalorder %s85, %s86
      %p100 = scmp.eq.s32.totalorder %s36, 1
      %p101 = por %p99, %p100
      %p103 = scmp.ne.s32.totalorder %s86, %s102
      %p104 = scmp.eq.s32.totalorder %s36, 0
      %p105 = por %p103, %p104
      %s106 = ssub.s32 %s30, %s37
      %p107 = scmp.eq.s32.totalorder %s106, 0
      %s109 = sadd.s32 %s108, 1
      %s110 = scalar_select %p107, %s108, %s109
      %p113 = pneg %p107
      %p114 = scmp.eq.s32.totalorder %s30, 1
      %p115 = por %p113, %p114
      %p116 = scmp.ne.s32.totalorder %s108, %s111
      %p117 = scmp.eq.s32.totalorder %s30, 0
      %p118 = por %p116, %p117
      %p119 = scmp.ne.s32.totalorder %s108, %s111
      %p120 = scmp.eq.s32.totalorder %s35, 1
      %p121 = por %p119, %p120
      %p122 = scmp.ne.s32.totalorder %s111, %s112
      %p123 = scmp.eq.s32.totalorder %s35, 0
      %p124 = por %p122, %p123
      %p125 = scmp.ne.s32.totalorder %s111, %s112
      %p126 = scmp.eq.s32.totalorder %s36, 1
      %p127 = por %p125, %p126
      %p129 = scmp.ne.s32.totalorder %s112, %s128
      %p130 = scmp.eq.s32.totalorder %s36, 0
      %p131 = por %p129, %p130
      %s132 = ssub.s32 %s30, %s37
      %p133 = scmp.eq.s32.totalorder %s132, 0
      %s135 = sadd.s32 %s134, 1
      %s136 = scalar_select %p133, %s134, %s135
      %p139 = pneg %p133
      %p140 = scmp.eq.s32.totalorder %s30, 1
      %p141 = por %p139, %p140
      %p142 = scmp.ne.s32.totalorder %s134, %s137
      %p143 = scmp.eq.s32.totalorder %s30, 0
      %p144 = por %p142, %p143
      %p145 = scmp.ne.s32.totalorder %s134, %s137
      %p146 = scmp.eq.s32.totalorder %s35, 1
      %p147 = por %p145, %p146
      %p148 = scmp.ne.s32.totalorder %s137, %s138
      %p149 = scmp.eq.s32.totalorder %s35, 0
      %p150 = por %p148, %p149
      %p151 = scmp.ne.s32.totalorder %s137, %s138
      %p152 = scmp.eq.s32.totalorder %s36, 1
      %p153 = por %p151, %p152
      %p155 = scmp.ne.s32.totalorder %s138, %s154
      %p156 = scmp.eq.s32.totalorder %s36, 0
      %p157 = por %p155, %p156
      %s158 = ssub.s32 %s30, %s37
      %p159 = scmp.eq.s32.totalorder %s158, 0
      %s161 = sadd.s32 %s160, 1
      %s162 = scalar_select %p159, %s160, %s161
      %p165 = pneg %p159
      %p166 = scmp.eq.s32.totalorder %s30, 1
      %p167 = por %p165, %p166
      %p168 = scmp.ne.s32.totalorder %s160, %s163
      %p169 = scmp.eq.s32.totalorder %s30, 0
      %p170 = por %p168, %p169
      %p171 = scmp.ne.s32.totalorder %s160, %s163
      %p172 = scmp.eq.s32.totalorder %s35, 1
      %p173 = por %p171, %p172
      %p174 = scmp.ne.s32.totalorder %s163, %s164
      %p175 = scmp.eq.s32.totalorder %s35, 0
      %p176 = por %p174, %p175
      %p177 = scmp.ne.s32.totalorder %s163, %s164
      %p178 = scmp.eq.s32.totalorder %s36, 1
      %p179 = por %p177, %p178
      %p181 = scmp.ne.s32.totalorder %s164, %s180
      %p182 = scmp.eq.s32.totalorder %s36, 0
      %p183 = por %p181, %p182
      %s184 = ssub.s32 %s30, %s37
      %p185 = scmp.eq.s32.totalorder %s184, 0
      %s187 = sadd.s32 %s186, 1
      %s188 = scalar_select %p185, %s186, %s187
      %p191 = pneg %p185
      %p192 = scmp.eq.s32.totalorder %s30, 1
      %p193 = por %p191, %p192
      %p194 = scmp.ne.s32.totalorder %s186, %s189
      %p195 = scmp.eq.s32.totalorder %s30, 0
      %p196 = por %p194, %p195
      %p197 = scmp.ne.s32.totalorder %s186, %s189
      %p198 = scmp.eq.s32.totalorder %s35, 1
      %p199 = por %p197, %p198
      %p200 = scmp.ne.s32.totalorder %s189, %s190
      %p201 = scmp.eq.s32.totalorder %s35, 0
      %p202 = por %p200, %p201
      %p203 = scmp.ne.s32.totalorder %s189, %s190
      %p204 = scmp.eq.s32.totalorder %s36, 1
      %p205 = por %p203, %p204
      %p207 = scmp.ne.s32.totalorder %s190, %s206
      %p208 = scmp.eq.s32.totalorder %s36, 0
      %p209 = por %p207, %p208
      %s210 = ssub.s32 %s30, %s37
      %p211 = scmp.eq.s32.totalorder %s210, 0
      %s213 = sadd.s32 %s212, 1
      %s214 = scalar_select %p211, %s212, %s213
      %p217 = pneg %p211
      %p218 = scmp.eq.s32.totalorder %s30, 1
      %p219 = por %p217, %p218
      %p220 = scmp.ne.s32.totalorder %s212, %s215
      %p221 = scmp.eq.s32.totalorder %s30, 0
      %p222 = por %p220, %p221
      %p223 = scmp.ne.s32.totalorder %s212, %s215
      %p224 = scmp.eq.s32.totalorder %s35, 1
      %p225 = por %p223, %p224
      %p226 = scmp.ne.s32.totalorder %s215, %s216
      %p227 = scmp.eq.s32.totalorder %s35, 0
      %p228 = por %p226, %p227
      %p229 = scmp.ne.s32.totalorder %s215, %s216
      %p230 = scmp.eq.s32.totalorder %s36, 1
      %p231 = por %p229, %p230
      %p233 = scmp.ne.s32.totalorder %s216, %s232
      %p234 = scmp.eq.s32.totalorder %s36, 0
      %p235 = por %p233, %p234
      %s236 = ssub.s32 %s30, %s37
      %p237 = scmp.eq.s32.totalorder %s236, 0
      %s239 = sadd.s32 %s238, 1
      %s240 = scalar_select %p237, %s238, %s239
      %p243 = pneg %p237
      %p244 = scmp.eq.s32.totalorder %s30, 1
      %p245 = por %p243, %p244
      %p246 = scmp.ne.s32.totalorder %s238, %s241
      %p247 = scmp.eq.s32.totalorder %s30, 0
      %p248 = por %p246, %p247
      %p249 = scmp.ne.s32.totalorder %s238, %s241
      %p250 = scmp.eq.s32.totalorder %s35, 1
      %p251 = por %p249, %p250
      %p252 = scmp.ne.s32.totalorder %s241, %s242
      %p253 = scmp.eq.s32.totalorder %s35, 0
      %p254 = por %p252, %p253
      %p255 = scmp.ne.s32.totalorder %s241, %s242
      %p256 = scmp.eq.s32.totalorder %s36, 1
      %p257 = por %p255, %p256
      %p259 = scmp.ne.s32.totalorder %s242, %s258
      %p260 = scmp.eq.s32.totalorder %s36, 0
      %p261 = por %p259, %p260
      %s262 = ssub.s32 %s30, %s37
      %p263 = scmp.eq.s32.totalorder %s262, 0
      %s265 = sadd.s32 %s264, 1
      %s266 = scalar_select %p263, %s264, %s265
      %p269 = pneg %p263
      %p270 = scmp.eq.s32.totalorder %s30, 1
      %p271 = por %p269, %p270
      %p272 = scmp.ne.s32.totalorder %s264, %s267
      %p273 = scmp.eq.s32.totalorder %s30, 0
      %p274 = por %p272, %p273
      %p275 = scmp.ne.s32.totalorder %s264, %s267
      %p276 = scmp.eq.s32.totalorder %s35, 1
      %p277 = por %p275, %p276
      %p278 = scmp.ne.s32.totalorder %s267, %s268
      %p279 = scmp.eq.s32.totalorder %s35, 0
      %p280 = por %p278, %p279
      %p281 = scmp.ne.s32.totalorder %s267, %s268
      %p282 = scmp.eq.s32.totalorder %s36, 1
      %p283 = por %p281, %p282
      %p285 = scmp.ne.s32.totalorder %s268, %s284
      %p286 = scmp.eq.s32.totalorder %s36, 0
      %p287 = por %p285, %p286
      %s288 = ssub.s32 %s30, %s37
      %p289 = scmp.eq.s32.totalorder %s288, 0
      %s291 = sadd.s32 %s290, 1
      %s292 = scalar_select %p289, %s290, %s291
      %p295 = pneg %p289
      %p296 = scmp.eq.s32.totalorder %s30, 1
      %p297 = por %p295, %p296
      %p298 = scmp.ne.s32.totalorder %s290, %s293
      %p299 = scmp.eq.s32.totalorder %s30, 0
      %p300 = por %p298, %p299
      %p301 = scmp.ne.s32.totalorder %s290, %s293
      %p302 = scmp.eq.s32.totalorder %s35, 1
      %p303 = por %p301, %p302
      %p304 = scmp.ne.s32.totalorder %s293, %s294
      %p305 = scmp.eq.s32.totalorder %s35, 0
      %p306 = por %p304, %p305
      %p307 = scmp.ne.s32.totalorder %s293, %s294
      %p308 = scmp.eq.s32.totalorder %s36, 1
      %p309 = por %p307, %p308
      %p311 = scmp.ne.s32.totalorder %s294, %s310
      %p312 = scmp.eq.s32.totalorder %s36, 0
      %p313 = por %p311, %p312
      %s314 = ssub.s32 %s30, %s37
      %p315 = scmp.eq.s32.totalorder %s314, 0
      %s317 = sadd.s32 %s316, 1
      %s318 = scalar_select %p315, %s316, %s317
      %p321 = pneg %p315
      %p322 = scmp.eq.s32.totalorder %s30, 1
      %p323 = por %p321, %p322
      %p324 = scmp.ne.s32.totalorder %s316, %s319
      %p325 = scmp.eq.s32.totalorder %s30, 0
      %p326 = por %p324, %p325
      %p327 = scmp.ne.s32.totalorder %s316, %s319
      %p328 = scmp.eq.s32.totalorder %s35, 1
      %p329 = por %p327, %p328
      %p330 = scmp.ne.s32.totalorder %s319, %s320
      %p331 = scmp.eq.s32.totalorder %s35, 0
      %p332 = por %p330, %p331
      %p333 = scmp.ne.s32.totalorder %s319, %s320
      %p334 = scmp.eq.s32.totalorder %s36, 1
      %p335 = por %p333, %p334
      %p337 = scmp.ne.s32.totalorder %s320, %s336
      %p338 = scmp.eq.s32.totalorder %s36, 0
      %p339 = por %p337, %p338
      %p340 = scmp.le.s32.totalorder 1, %s30
      %p341 = scmp.lt.s32.totalorder %s30, 3
      %p342 = pnand %p340, %p341
      %p343 = pneg %p342
      // Predicated region
      $region9: #{tpu_custom_call.1} parent=5 // pred_check
        _
      $region10: #{tpu_custom_call.1} parent=5 // pred_check_branch
        %345 = sbr.rel (%p342) target = $region12
      $region11: #{tpu_custom_call.1} parent=5 // pred_region
        %s346 = ssub.s32 %s30, 1
        // Predicated region
        $region13: #{tpu_custom_call.1} parent=11 // pred_check
          %p347 = pneg %p51
        $region14: #{tpu_custom_call.1} parent=11 // pred_check_branch
          %349 = sbr.rel (%p347) target = $region16
        $region15: #{tpu_custom_call.1} parent=11 // pred_region
          %s351 = ssub.s32 16, 16
          %352 = vsyncadd [#allocation3], %s351
          %s354 = sshll.u32 [#allocation2], 4
          %s355 = int_to_ptr.vmem [resolvable:$true] %s354
          %357 = dma.hbm_to_vmem [thread:$0]  %s0, 16, %s355, [#allocation3]
        $region16: #{tpu_custom_call.1} parent=11 // pred_fallthru
          _
        // Predicated region
        $region17: #{tpu_custom_call.1} parent=11 // pred_check
          %p358 = pneg %p72
        $region18: #{tpu_custom_call.1} parent=11 // pred_check_branch
          %360 = sbr.rel (%p358) target = $region20
        $region19: #{tpu_custom_call.1} parent=11 // pred_region
          _
        $region20: #{tpu_custom_call.1} parent=11 // pred_fallthru
          _
      $region12: #{tpu_custom_call.1} parent=5 // pred_fallthru
        _
      %p361 = scmp.lt.s32.totalorder %s30, 2
      // Predicated region
      $region21: #{tpu_custom_call.1} parent=5 // pred_check
        %p362 = pneg %p361
      $region22: #{tpu_custom_call.1} parent=5 // pred_check_branch
        %364 = sbr.rel (%p362) target = $region24
      $region23: #{tpu_custom_call.1} parent=5 // pred_region
        // Predicated region
        $region25: #{tpu_custom_call.1} parent=23 // pred_check
          %p365 = pneg %p92
        $region26: #{tpu_custom_call.1} parent=23 // pred_check_branch
          %367 = sbr.rel (%p365) target = $region28
        $region27: #{tpu_custom_call.1} parent=23 // pred_region
          %s368 = sand.u32 %s30, 1
          %s369 = scalar_lea.sflag [#allocation6], %s368
          %s370 = sand.u32 %s82, 1
          %s371 = smul.addr %s370, 16
          %s372 = scalar_lea.vmem [#allocation5], %s371
          %s373 = smul.u32 2, %s30
          %s375 = ssub.s32 256, 256
          %376 = vsyncadd %s369, %s375
          %s377 = smul.addr %s373, 128
          %s378 = scalar_lea.hbm %s2, %s377
          %s379 = sshll.u32 %s372, 4
          %s380 = int_to_ptr.vmem [resolvable:$true] %s379
          %385 = dma.hbm_to_vmem [thread:$0]  %s378, 256, %s380, %s369, 128, 128, 8
        $region28: #{tpu_custom_call.1} parent=23 // pred_fallthru
          _
        // Predicated region
        $region29: #{tpu_custom_call.1} parent=23 // pred_check
          %p386 = pneg %p118
        $region30: #{tpu_custom_call.1} parent=23 // pred_check_branch
          %388 = sbr.rel (%p386) target = $region32
        $region31: #{tpu_custom_call.1} parent=23 // pred_region
          %s389 = sand.u32 %s30, 1
          %s390 = scalar_lea.sflag [#allocation6], %s389
          %s391 = sand.u32 %s108, 1
          %s392 = smul.addr %s391, 128
          %s393 = scalar_lea.vmem [#allocation7], %s392
          %s394 = smul.u32 2, %s30
          %s396 = ssub.s32 2048, 2048
          %397 = vsyncadd %s390, %s396
          %s398 = smul.addr %s394, 8
          %s399 = smul.addr %s398, 128
          %s400 = scalar_lea.hbm %s3, %s399
          %s401 = sshll.u32 %s393, 4
          %s402 = int_to_ptr.vmem [resolvable:$true] %s401
          %407 = dma.hbm_to_vmem [thread:$0]  %s400, 2048, %s402, %s390, 256, 256, 16
        $region32: #{tpu_custom_call.1} parent=23 // pred_fallthru
          _
        // Predicated region
        $region33: #{tpu_custom_call.1} parent=23 // pred_check
          %p408 = pneg %p144
        $region34: #{tpu_custom_call.1} parent=23 // pred_check_branch
          %410 = sbr.rel (%p408) target = $region36
        $region35: #{tpu_custom_call.1} parent=23 // pred_region
          %s411 = smul.u32 2, %s30
          %p412 = scmp.lt.s32.totalorder %s411, 3
          %s413 = scalar_select %p412, %s411, 3
          %s414 = smul.addr %s413, 2
          %s415 = scalar_lea.vmem %s4, %s414
          %s416 = smul.u32 2, %s30
        $region36: #{tpu_custom_call.1} parent=23 // pred_fallthru
          _
        // Predicated region
        $region37: #{tpu_custom_call.1} parent=23 // pred_check
          %p417 = pneg %p170
        $region38: #{tpu_custom_call.1} parent=23 // pred_check_branch
          %419 = sbr.rel (%p417) target = $region40
        $region39: #{tpu_custom_call.1} parent=23 // pred_region
          %s420 = sand.u32 %s30, 1
          %s421 = scalar_lea.sflag [#allocation9], %s420
          %s422 = sand.u32 %s160, 1
          %s423 = smul.addr %s422, 1024
          %s424 = scalar_lea.vmem [#allocation8], %s423
          %s425 = smul.u32 2, %s30
          %s427 = ssub.s32 16384, 16384
          %428 = vsyncadd %s421, %s427
          %s429 = smul.addr %s425, 64
          %s430 = smul.addr %s429, 128
          %s431 = scalar_lea.hbm %s5, %s430
          %s432 = sshll.u32 %s424, 4
          %s433 = int_to_ptr.vmem [resolvable:$true] %s432
          %438 = dma.hbm_to_vmem [thread:$0]  %s431, 16384, %s433, %s421, 256, 256, 16
        $region40: #{tpu_custom_call.1} parent=23 // pred_fallthru
          _
        // Predicated region
        $region41: #{tpu_custom_call.1} parent=23 // pred_check
          %p439 = pneg %p196
        $region42: #{tpu_custom_call.1} parent=23 // pred_check_branch
          %441 = sbr.rel (%p439) target = $region44
        $region43: #{tpu_custom_call.1} parent=23 // pred_region
          %s442 = smul.u32 2, %s30
          %p443 = scmp.lt.s32.totalorder %s442, 3
          %s444 = scalar_select %p443, %s442, 3
          %s445 = smul.addr %s444, 2
          %s446 = scalar_lea.vmem %s6, %s445
          %s447 = smul.u32 2, %s30
        $region44: #{tpu_custom_call.1} parent=23 // pred_fallthru
          _
        // Predicated region
        $region45: #{tpu_custom_call.1} parent=23 // pred_check
          %p448 = pneg %p222
        $region46: #{tpu_custom_call.1} parent=23 // pred_check_branch
          %450 = sbr.rel (%p448) target = $region48
        $region47: #{tpu_custom_call.1} parent=23 // pred_region
          %s451 = sand.u32 %s30, 1
          %s452 = scalar_lea.sflag [#allocation9], %s451
          %s453 = sand.u32 %s212, 1
          %s454 = smul.addr %s453, 1024
          %s455 = scalar_lea.vmem [#allocation10], %s454
          %s456 = smul.u32 2, %s30
          %s458 = ssub.s32 16384, 16384
          %459 = vsyncadd %s452, %s458
          %s460 = smul.addr %s456, 64
          %s461 = smul.addr %s460, 128
          %s462 = scalar_lea.hbm %s7, %s461
          %s463 = sshll.u32 %s455, 4
          %s464 = int_to_ptr.vmem [resolvable:$true] %s463
          %469 = dma.hbm_to_vmem [thread:$0]  %s462, 16384, %s464, %s452, 256, 256, 16
        $region48: #{tpu_custom_call.1} parent=23 // pred_fallthru
          _
        // Predicated region
        $region49: #{tpu_custom_call.1} parent=23 // pred_check
          %p470 = pneg %p248
        $region50: #{tpu_custom_call.1} parent=23 // pred_check_branch
          %472 = sbr.rel (%p470) target = $region52
        $region51: #{tpu_custom_call.1} parent=23 // pred_region
          %s473 = smul.u32 2, %s30
          %p474 = scmp.lt.s32.totalorder %s473, 3
          %s475 = scalar_select %p474, %s473, 3
          %s476 = smul.addr %s475, 2
          %s477 = scalar_lea.vmem %s8, %s476
          %s478 = smul.u32 2, %s30
        $region52: #{tpu_custom_call.1} parent=23 // pred_fallthru
          _
        // Predicated region
        $region53: #{tpu_custom_call.1} parent=23 // pred_check
          %p479 = pneg %p274
        $region54: #{tpu_custom_call.1} parent=23 // pred_check_branch
          %481 = sbr.rel (%p479) target = $region56
        $region55: #{tpu_custom_call.1} parent=23 // pred_region
          %s482 = sand.u32 %s264, 1
          %s483 = scalar_lea.sflag [#allocation12], %s482
          %s484 = sand.u32 %s264, 1
          %s485 = smul.addr %s484, 512
          %s486 = scalar_lea.vmem [#allocation11], %s485
          %s487 = smul.u32 2, %s30
          %s489 = ssub.s32 8192, 8192
          %490 = vsyncadd %s483, %s489
          %s491 = smul.addr %s487, 32
          %s492 = smul.addr %s491, 128
          %s493 = scalar_lea.hbm %s9, %s492
          %s494 = sshll.u32 %s486, 4
          %s495 = int_to_ptr.vmem [resolvable:$true] %s494
          %500 = dma.hbm_to_vmem [thread:$0]  %s493, 8192, %s495, %s483, 128, 128, 8
        $region56: #{tpu_custom_call.1} parent=23 // pred_fallthru
          _
        // Predicated region
        $region57: #{tpu_custom_call.1} parent=23 // pred_check
          %p501 = pneg %p300
        $region58: #{tpu_custom_call.1} parent=23 // pred_check_branch
          %503 = sbr.rel (%p501) target = $region60
        $region59: #{tpu_custom_call.1} parent=23 // pred_region
          %s504 = smul.u32 2, %s30
          %p505 = scmp.lt.s32.totalorder %s504, 3
          %s506 = scalar_select %p505, %s504, 3
          %s507 = scalar_lea.vmem %s10, %s506
          %s508 = smul.u32 2, %s30
        $region60: #{tpu_custom_call.1} parent=23 // pred_fallthru
          _
      $region24: #{tpu_custom_call.1} parent=5 // pred_fallthru
        _
      %p509 = scmp.le.s32.totalorder 1, %s30
      %p510 = scmp.lt.s32.totalorder %s30, 3
      %p511 = pnand %p509, %p510
      %p512 = pneg %p511
      // Predicated region
      $region61: #{tpu_custom_call.1} parent=5 // pred_check
        _
      $region62: #{tpu_custom_call.1} parent=5 // pred_check_branch
        %514 = sbr.rel (%p511) target = $region64
      $region63: #{tpu_custom_call.1} parent=5 // pred_region
        %s515 = ssub.s32 %s30, 1
        // Predicated region
        $region65: #{tpu_custom_call.1} parent=63 // pred_check
          %p516 = pneg %p51
        $region66: #{tpu_custom_call.1} parent=63 // pred_check_branch
          %518 = sbr.rel (%p516) target = $region68
        $region67: #{tpu_custom_call.1} parent=63 // pred_region
          %519 = dma.done [#allocation3], 16
        $region68: #{tpu_custom_call.1} parent=63 // pred_fallthru
          _
        %s520 = sand.u32 %s35, 1
        %s521 = scalar_lea.sflag [#allocation6], %s520
        %s522 = sand.u32 %s85, 1
        %s523 = smul.addr %s522, 16
        %s524 = scalar_lea.vmem [#allocation5], %s523
        // Predicated region
        $region69: #{tpu_custom_call.1} parent=63 // pred_check
          %p525 = pneg %p98
        $region70: #{tpu_custom_call.1} parent=63 // pred_check_branch
          %527 = sbr.rel (%p525) target = $region72
        $region71: #{tpu_custom_call.1} parent=63 // pred_region
          %528 = dma.done %s521, 256
        $region72: #{tpu_custom_call.1} parent=63 // pred_fallthru
          _
        %s529 = sand.u32 %s35, 1
        %s530 = scalar_lea.sflag [#allocation6], %s529
        %s531 = sand.u32 %s111, 1
        %s532 = smul.addr %s531, 128
        %s533 = scalar_lea.vmem [#allocation7], %s532
        // Predicated region
        $region73: #{tpu_custom_call.1} parent=63 // pred_check
          %p534 = pneg %p124
        $region74: #{tpu_custom_call.1} parent=63 // pred_check_branch
          %536 = sbr.rel (%p534) target = $region76
        $region75: #{tpu_custom_call.1} parent=63 // pred_region
          %537 = dma.done %s530, 2048
        $region76: #{tpu_custom_call.1} parent=63 // pred_fallthru
          _
        %s538 = sand.u32 %s35, 1
        %s539 = scalar_lea.sflag [#allocation9], %s538
        %s540 = sand.u32 %s163, 1
        %s541 = smul.addr %s540, 1024
        %s542 = scalar_lea.vmem [#allocation8], %s541
        // Predicated region
        $region77: #{tpu_custom_call.1} parent=63 // pred_check
          %p543 = pneg %p176
        $region78: #{tpu_custom_call.1} parent=63 // pred_check_branch
          %545 = sbr.rel (%p543) target = $region80
        $region79: #{tpu_custom_call.1} parent=63 // pred_region
          %546 = dma.done %s539, 16384
        $region80: #{tpu_custom_call.1} parent=63 // pred_fallthru
          _
        %s547 = sand.u32 %s35, 1
        %s548 = scalar_lea.sflag [#allocation9], %s547
        %s549 = sand.u32 %s215, 1
        %s550 = smul.addr %s549, 1024
        %s551 = scalar_lea.vmem [#allocation10], %s550
        // Predicated region
        $region81: #{tpu_custom_call.1} parent=63 // pred_check
          %p552 = pneg %p228
        $region82: #{tpu_custom_call.1} parent=63 // pred_check_branch
          %554 = sbr.rel (%p552) target = $region84
        $region83: #{tpu_custom_call.1} parent=63 // pred_region
          %555 = dma.done %s548, 16384
        $region84: #{tpu_custom_call.1} parent=63 // pred_fallthru
          _
        %s556 = sand.u32 %s267, 1
        %s557 = scalar_lea.sflag [#allocation12], %s556
        %s558 = sand.u32 %s267, 1
        %s559 = smul.addr %s558, 512
        %s560 = scalar_lea.vmem [#allocation11], %s559
        // Predicated region
        $region85: #{tpu_custom_call.1} parent=63 // pred_check
          %p561 = pneg %p280
        $region86: #{tpu_custom_call.1} parent=63 // pred_check_branch
          %563 = sbr.rel (%p561) target = $region88
        $region87: #{tpu_custom_call.1} parent=63 // pred_region
          %564 = dma.done %s557, 8192
        $region88: #{tpu_custom_call.1} parent=63 // pred_fallthru
          _
        %p565 = pneg %p51
        %p566 = pneg %p48
        %p567 = pneg %p72
        %p568 = pneg %p69
        %s569 = sand.u32 %s35, 1
        %s570 = scalar_lea.sflag [#allocation6], %s569
        %s571 = sand.u32 %s85, 1
        %s572 = smul.addr %s571, 16
        %s573 = scalar_lea.vmem [#allocation5], %s572
        %p574 = pneg %p98
        %p575 = pneg %p95
        %s576 = sand.u32 %s35, 1
        %s577 = scalar_lea.sflag [#allocation6], %s576
        %s578 = sand.u32 %s111, 1
        %s579 = smul.addr %s578, 128
        %s580 = scalar_lea.vmem [#allocation7], %s579
        %p581 = pneg %p124
        %p582 = pneg %p121
        %s583 = smul.u32 2, %s35
        %p584 = scmp.lt.s32.totalorder %s583, 3
        %s585 = scalar_select %p584, %s583, 3
        %s586 = smul.addr %s585, 2
        %s587 = scalar_lea.vmem %s4, %s586
        %p588 = pneg %p150
        %p589 = pneg %p147
        %s590 = sand.u32 %s35, 1
        %s591 = scalar_lea.sflag [#allocation9], %s590
        %s592 = sand.u32 %s163, 1
        %s593 = smul.addr %s592, 1024
        %s594 = scalar_lea.vmem [#allocation8], %s593
        %p595 = pneg %p176
        %p596 = pneg %p173
        %s597 = smul.u32 2, %s35
        %p598 = scmp.lt.s32.totalorder %s597, 3
        %s599 = scalar_select %p598, %s597, 3
        %s600 = smul.addr %s599, 2
        %s601 = scalar_lea.vmem %s6, %s600
        %p602 = pneg %p202
        %p603 = pneg %p199
        %s604 = sand.u32 %s35, 1
        %s605 = scalar_lea.sflag [#allocation9], %s604
        %s606 = sand.u32 %s215, 1
        %s607 = smul.addr %s606, 1024
        %s608 = scalar_lea.vmem [#allocation10], %s607
        %p609 = pneg %p228
        %p610 = pneg %p225
        %s611 = smul.u32 2, %s35
        %p612 = scmp.lt.s32.totalorder %s611, 3
        %s613 = scalar_select %p612, %s611, 3
        %s614 = smul.addr %s613, 2
        %s615 = scalar_lea.vmem %s8, %s614
        %p616 = pneg %p254
        %p617 = pneg %p251
        %s618 = sand.u32 %s267, 1
        %s619 = scalar_lea.sflag [#allocation12], %s618
        %s620 = sand.u32 %s267, 1
        %s621 = smul.addr %s620, 512
        %s622 = scalar_lea.vmem [#allocation11], %s621
        %p623 = pneg %p280
        %p624 = pneg %p277
        %s625 = smul.u32 2, %s35
        %p626 = scmp.lt.s32.totalorder %s625, 3
        %s627 = scalar_select %p626, %s625, 3
        %s628 = scalar_lea.vmem %s10, %s627
        %p629 = pneg %p306
        %p630 = pneg %p303
        %p631 = pneg %p332
        %p632 = pneg %p329
        %s633 = sand.u32 %s319, 1
        %s634 = scalar_lea.sflag [#allocation4], %s633
        %s635 = sand.u32 %s319, 1
        %s636 = smul.addr %s635, 16
        %s637 = scalar_lea.vmem [#allocation13], %s636
        %s638 = smul.u32 2, %s35
        %s639 = smul.u32 2, %s35
        %s640 = smul.u32 2, %s35
        %p641 = scmp.lt.s32.totalorder %s640, 3
        %s642 = scalar_select %p641, %s640, 3
        %s643 = smul.addr %s642, 2
        %s644 = scalar_lea.vmem %s4, %s643
        %s645 = smul.u32 2, %s35
        %s646 = smul.u32 2, %s35
        %s647 = smul.u32 2, %s35
        %p648 = scmp.lt.s32.totalorder %s647, 3
        %s649 = scalar_select %p648, %s647, 3
        %s650 = smul.addr %s649, 2
        %s651 = scalar_lea.vmem %s6, %s650
        %s652 = smul.u32 2, %s35
        %s653 = smul.u32 2, %s35
        %s654 = smul.u32 2, %s35
        %p655 = scmp.lt.s32.totalorder %s654, 3
        %s656 = scalar_select %p655, %s654, 3
        %s657 = smul.addr %s656, 2
        %s658 = scalar_lea.vmem %s8, %s657
        %s659 = smul.u32 2, %s35
        %s660 = smul.u32 2, %s35
        %s661 = smul.u32 2, %s35
        %p662 = scmp.lt.s32.totalorder %s661, 3
        %s663 = scalar_select %p662, %s661, 3
        %s664 = scalar_lea.vmem %s10, %s663
        %s665 = smul.u32 2, %s35
        %s666 = smul.u32 2, %s35
        %v667 = vld [vmem:[#allocation2] sm:$0x1]
        %v668 = vld [vmem:[%s1] sm:$0x1]
        %v669 = vlaneseq
        %v670 = vand.u32 %v669, 127
        %vm671 = vcmp.lt.s32.totalorder %v670, 4
        %v672 = vld [vmem:[%s524] sm:$0xff]
        %v673 = vld [vmem:[%s533] sm:$0xff]
        %v674 = vld [vmem:[%s533 + $0x8] sm:$0xff]
        %v675 = vld [vmem:[%s533 + $0x10] sm:$0xff]
        %v676 = vld [vmem:[%s533 + $0x18] sm:$0xff]
        %v677 = vld [vmem:[%s533 + $0x20] sm:$0xff]
        %v678 = vld [vmem:[%s533 + $0x28] sm:$0xff]
        %v679 = vld [vmem:[%s533 + $0x30] sm:$0xff]
        %v680 = vld [vmem:[%s533 + $0x38] sm:$0xff]
        %v681 = vld [vmem:[%s644] sm:$0x3]
        %v683 = vlaneseq
        %v684 = vshrl.u32 %v683, 7
        %v685 = vsub.s32 0, %v684
        %v686 = vrot.slane %v681, %v685
        %v687 = vlaneseq
        %v688 = vshrl.u32 %v687, 7
        %v689 = vsub.s32 1, %v688
        %v690 = vrot.slane %v681, %v689
        %vm693 = vcmask 261120
        %v695 = vsel %vm693, %v672, 0
        %697 = vmatprep.subr.mxu0 %v674
        %698 = vmatpush1.msra.mxu0 %v673
        %699 = vmatprep.subr.mxu0 %v676
        %700 = vmatpush1.msra.mxu0 %v675
        %701 = vmatprep.subr.mxu0 %v678
        %702 = vmatpush1.msra.mxu0 %v677
        %703 = vmatprep.subr.mxu0 %v680
        %704 = vmatpush1.msra.mxu0 %v679
        %705 = vmatprep.subr.mxu0 0.0
        %706 = vmatpush1.msra.mxu0 0.0
        %707 = vmatprep.subr.mxu0 0.0
        %708 = vmatpush1.msra.mxu0 0.0
        %709 = vmatprep.subr.mxu0 0.0
        %710 = vmatpush1.msra.mxu0 0.0
        %711 = vmatprep.subr.mxu0 0.0
        %712 = vmatpush1.msra.mxu0 0.0
        %713 = vmatprep.subr.mxu0 0.0
        %714 = vmatpush1.msra.mxu0 0.0
        %715 = vmatprep.subr.mxu0 0.0
        %716 = vmatpush1.msra.mxu0 0.0
        %717 = vmatprep.subr.mxu0 0.0
        %718 = vmatpush1.msra.mxu0 0.0
        %719 = vmatprep.subr.mxu0 0.0
        %720 = vmatpush1.msra.mxu0 0.0
        %721 = vmatprep.subr.mxu0 0.0
        %722 = vmatpush1.msra.mxu0 0.0
        %723 = vmatprep.subr.mxu0 0.0
        %724 = vmatpush1.msra.mxu0 0.0
        %725 = vmatprep.subr.mxu0 0.0
        %726 = vmatpush1.msra.mxu0 0.0
        %727 = vmatprep.subr.mxu0 0.0
        %728 = vmatpush1.msra.mxu0 0.0
        %729 = vmatprep.subr.mxu0 0.0
        %730 = vmatpush1.msra.mxu0 0.0
        %731 = vmatprep.subr.mxu0 0.0
        %732 = vmatpush1.msra.mxu0 0.0
        %733 = vmatprep.subr.mxu0 0.0
        %734 = vmatpush1.msra.mxu0 0.0
        %735 = vmatprep.subr.mxu0 0.0
        %736 = vmatpush1.msra.mxu0 0.0
        %737 = vmatprep.subr.mxu0 0.0
        %738 = vmatpush1.msra.mxu0 0.0
        %739 = vmatprep.subr.mxu0 0.0
        %740 = vmatpush1.msra.mxu0 0.0
        %741 = vmatprep.subr.mxu0 0.0
        %742 = vmatpush1.msra.mxu0 0.0
        %743 = vmatprep.subr.mxu0 0.0
        %744 = vmatpush1.msra.mxu0 0.0
        %745 = vmatprep.subr.mxu0 0.0
        %746 = vmatpush1.msra.mxu0 0.0
        %747 = vmatprep.subr.mxu0 0.0
        %748 = vmatpush1.msra.mxu0 0.0
        %749 = vmatprep.subr.mxu0 0.0
        %750 = vmatpush1.msra.mxu0 0.0
        %751 = vmatprep.subr.mxu0 0.0
        %752 = vmatpush1.msra.mxu0 0.0
        %753 = vmatprep.subr.mxu0 0.0
        %754 = vmatpush1.msra.mxu0 0.0
        %755 = vmatprep.subr.mxu0 0.0
        %756 = vmatpush1.msra.mxu0 0.0
        %757 = vmatprep.subr.mxu0 0.0
        %758 = vmatpush1.msra.mxu0 0.0
        %759 = vmatprep.subr.mxu0 0.0
        %760 = vmatpush1.msra.mxu0 0.0
        %761 = vmatprep.mubr.f32.mxu0 0.0
        %762 = vmatmul.mubr.f32.gmra.mrb[0].mxu0 %v695
        %v763 = vpop.f32.mrb[0].mxu0
        %v764 = vadd.f32 %v686, %v763
        %v765 = vpop.f32.mrb[0].mxu0
        %v766 = vadd.f32 %v690, %v765
        %767 = vdwg.mxu0
        %v768 = vxor.u32 %v764, 2147483648
        %v769 = vxor.u32 %v766, 2147483648
        %v770 = vmul.f32 %v768, 1.442695
        %v771 = vpow.pop %v770
        %v772 = vmul.f32 %v769, 1.442695
        %v773 = vpow.pop %v772
        %v774 = vadd.f32 %v771, 1.0
        %v775 = vadd.f32 %v773, 1.0
        %v776 = vrcp.pop %v774
        %v777 = vmul.f32 1.0, %v776
        %v778 = vrcp.pop %v775
        %v779 = vmul.f32 1.0, %v778
        %v780 = vmul.f32 %v764, %v777
        %v781 = vmul.f32 %v766, %v779
        %v782 = vld [vmem:[%s542] sm:$0xff]
        %v783 = vld [vmem:[%s542 + $0x8] sm:$0xff]
        %v784 = vld [vmem:[%s542 + $0x10] sm:$0xff]
        %v785 = vld [vmem:[%s542 + $0x18] sm:$0xff]
        %v786 = vld [vmem:[%s542 + $0x20] sm:$0xff]
        %v787 = vld [vmem:[%s542 + $0x28] sm:$0xff]
        %v788 = vld [vmem:[%s542 + $0x30] sm:$0xff]
        %v789 = vld [vmem:[%s542 + $0x38] sm:$0xff]
        %v790 = vld [vmem:[%s542 + $0x40] sm:$0xff]
        %v791 = vld [vmem:[%s542 + $0x48] sm:$0xff]
        %v792 = vld [vmem:[%s542 + $0x50] sm:$0xff]
        %v793 = vld [vmem:[%s542 + $0x58] sm:$0xff]
        %v794 = vld [vmem:[%s542 + $0x60] sm:$0xff]
        %v795 = vld [vmem:[%s542 + $0x68] sm:$0xff]
        %v796 = vld [vmem:[%s542 + $0x70] sm:$0xff]
        %v797 = vld [vmem:[%s542 + $0x78] sm:$0xff]
        %v798 = vld [vmem:[%s542 + $0x80] sm:$0xff]
        %v799 = vld [vmem:[%s542 + $0x88] sm:$0xff]
        %v800 = vld [vmem:[%s542 + $0x90] sm:$0xff]
        %v801 = vld [vmem:[%s542 + $0x98] sm:$0xff]
        %v802 = vld [vmem:[%s542 + $0xa0] sm:$0xff]
        %v803 = vld [vmem:[%s542 + $0xa8] sm:$0xff]
        %v804 = vld [vmem:[%s542 + $0xb0] sm:$0xff]
        %v805 = vld [vmem:[%s542 + $0xb8] sm:$0xff]
        %v806 = vld [vmem:[%s542 + $0xc0] sm:$0xff]
        %v807 = vld [vmem:[%s542 + $0xc8] sm:$0xff]
        %v808 = vld [vmem:[%s542 + $0xd0] sm:$0xff]
        %v809 = vld [vmem:[%s542 + $0xd8] sm:$0xff]
        %v810 = vld [vmem:[%s542 + $0xe0] sm:$0xff]
        %v811 = vld [vmem:[%s542 + $0xe8] sm:$0xff]
        %v812 = vld [vmem:[%s542 + $0xf0] sm:$0xff]
        %v813 = vld [vmem:[%s542 + $0xf8] sm:$0xff]
        %v814 = vld [vmem:[%s542 + $0x100] sm:$0xff]
        %v815 = vld [vmem:[%s542 + $0x108] sm:$0xff]
        %v816 = vld [vmem:[%s542 + $0x110] sm:$0xff]
        %v817 = vld [vmem:[%s542 + $0x118] sm:$0xff]
        %v818 = vld [vmem:[%s542 + $0x120] sm:$0xff]
        %v819 = vld [vmem:[%s542 + $0x128] sm:$0xff]
        %v820 = vld [vmem:[%s542 + $0x130] sm:$0xff]
        %v821 = vld [vmem:[%s542 + $0x138] sm:$0xff]
        %v822 = vld [vmem:[%s542 + $0x140] sm:$0xff]
        %v823 = vld [vmem:[%s542 + $0x148] sm:$0xff]
        %v824 = vld [vmem:[%s542 + $0x150] sm:$0xff]
        %v825 = vld [vmem:[%s542 + $0x158] sm:$0xff]
        %v826 = vld [vmem:[%s542 + $0x160] sm:$0xff]
        %v827 = vld [vmem:[%s542 + $0x168] sm:$0xff]
        %v828 = vld [vmem:[%s542 + $0x170] sm:$0xff]
        %v829 = vld [vmem:[%s542 + $0x178] sm:$0xff]
        %v830 = vld [vmem:[%s542 + $0x180] sm:$0xff]
        %v831 = vld [vmem:[%s542 + $0x188] sm:$0xff]
        %v832 = vld [vmem:[%s542 + $0x190] sm:$0xff]
        %v833 = vld [vmem:[%s542 + $0x198] sm:$0xff]
        %v834 = vld [vmem:[%s542 + $0x1a0] sm:$0xff]
        %v835 = vld [vmem:[%s542 + $0x1a8] sm:$0xff]
        %v836 = vld [vmem:[%s542 + $0x1b0] sm:$0xff]
        %v837 = vld [vmem:[%s542 + $0x1b8] sm:$0xff]
        %v838 = vld [vmem:[%s542 + $0x1c0] sm:$0xff]
        %v839 = vld [vmem:[%s542 + $0x1c8] sm:$0xff]
        %v840 = vld [vmem:[%s542 + $0x1d0] sm:$0xff]
        %v841 = vld [vmem:[%s542 + $0x1d8] sm:$0xff]
        %v842 = vld [vmem:[%s542 + $0x1e0] sm:$0xff]
        %v843 = vld [vmem:[%s542 + $0x1e8] sm:$0xff]
        %v844 = vld [vmem:[%s542 + $0x1f0] sm:$0xff]
        %v845 = vld [vmem:[%s542 + $0x1f8] sm:$0xff]
        %v846 = vld [vmem:[%s651] sm:$0x3]
        %v848 = vlaneseq
        %v849 = vshrl.u32 %v848, 7
        %v850 = vsub.s32 0, %v849
        %v851 = vrot.slane %v846, %v850
        %v852 = vlaneseq
        %v853 = vshrl.u32 %v852, 7
        %v854 = vsub.s32 1, %v853
        %v855 = vrot.slane %v846, %v854
        %858 = vmatprep.subr.mxu0 %v783
        %859 = vmatpush1.msra.mxu0 %v782
        %860 = vmatprep.subr.mxu0 %v785
        %861 = vmatpush1.msra.mxu0 %v784
        %862 = vmatprep.subr.mxu0 %v787
        %863 = vmatpush1.msra.mxu0 %v786
        %864 = vmatprep.subr.mxu0 %v789
        %865 = vmatpush1.msra.mxu0 %v788
        %866 = vmatprep.subr.mxu0 %v791
        %867 = vmatpush1.msra.mxu0 %v790
        %868 = vmatprep.subr.mxu0 %v793
        %869 = vmatpush1.msra.mxu0 %v792
        %870 = vmatprep.subr.mxu0 %v795
        %871 = vmatpush1.msra.mxu0 %v794
        %872 = vmatprep.subr.mxu0 %v797
        %873 = vmatpush1.msra.mxu0 %v796
        %874 = vmatprep.subr.mxu0 %v799
        %875 = vmatpush1.msra.mxu0 %v798
        %876 = vmatprep.subr.mxu0 %v801
        %877 = vmatpush1.msra.mxu0 %v800
        %878 = vmatprep.subr.mxu0 %v803
        %879 = vmatpush1.msra.mxu0 %v802
        %880 = vmatprep.subr.mxu0 %v805
        %881 = vmatpush1.msra.mxu0 %v804
        %882 = vmatprep.subr.mxu0 %v807
        %883 = vmatpush1.msra.mxu0 %v806
        %884 = vmatprep.subr.mxu0 %v809
        %885 = vmatpush1.msra.mxu0 %v808
        %886 = vmatprep.subr.mxu0 %v811
        %887 = vmatpush1.msra.mxu0 %v810
        %888 = vmatprep.subr.mxu0 %v813
        %889 = vmatpush1.msra.mxu0 %v812
        %890 = vmatprep.subr.mxu0 %v815
        %891 = vmatpush1.msra.mxu0 %v814
        %892 = vmatprep.subr.mxu0 %v817
        %893 = vmatpush1.msra.mxu0 %v816
        %894 = vmatprep.subr.mxu0 %v819
        %895 = vmatpush1.msra.mxu0 %v818
        %896 = vmatprep.subr.mxu0 %v821
        %897 = vmatpush1.msra.mxu0 %v820
        %898 = vmatprep.subr.mxu0 %v823
        %899 = vmatpush1.msra.mxu0 %v822
        %900 = vmatprep.subr.mxu0 %v825
        %901 = vmatpush1.msra.mxu0 %v824
        %902 = vmatprep.subr.mxu0 %v827
        %903 = vmatpush1.msra.mxu0 %v826
        %904 = vmatprep.subr.mxu0 %v829
        %905 = vmatpush1.msra.mxu0 %v828
        %906 = vmatprep.subr.mxu0 %v831
        %907 = vmatpush1.msra.mxu0 %v830
        %908 = vmatprep.subr.mxu0 %v833
        %909 = vmatpush1.msra.mxu0 %v832
        %910 = vmatprep.subr.mxu0 %v835
        %911 = vmatpush1.msra.mxu0 %v834
        %912 = vmatprep.subr.mxu0 %v837
        %913 = vmatpush1.msra.mxu0 %v836
        %914 = vmatprep.subr.mxu0 %v839
        %915 = vmatpush1.msra.mxu0 %v838
        %916 = vmatprep.subr.mxu0 %v841
        %917 = vmatpush1.msra.mxu0 %v840
        %918 = vmatprep.subr.mxu0 %v843
        %919 = vmatpush1.msra.mxu0 %v842
        %920 = vmatprep.subr.mxu0 %v845
        %921 = vmatpush1.msra.mxu0 %v844
        %922 = vmatprep.mubr.f32.mxu0 %v781
        %923 = vmatmul.mubr.f32.gmra.mrb[0].mxu0 %v780
        %v924 = vpop.f32.mrb[0].mxu0
        %v925 = vadd.f32 %v851, %v924
        %v926 = vpop.f32.mrb[0].mxu0
        %v927 = vadd.f32 %v855, %v926
        %928 = vdwg.mxu0
        %v929 = vxor.u32 %v925, 2147483648
        %v930 = vxor.u32 %v927, 2147483648
        %v931 = vmul.f32 %v929, 1.442695
        %v932 = vpow.pop %v931
        %v933 = vmul.f32 %v930, 1.442695
        %v934 = vpow.pop %v933
        %v935 = vadd.f32 %v932, 1.0
        %v936 = vadd.f32 %v934, 1.0
        %v937 = vrcp.pop %v935
        %v938 = vmul.f32 1.0, %v937
        %v939 = vrcp.pop %v936
        %v940 = vmul.f32 1.0, %v939
        %v941 = vmul.f32 %v925, %v938
        %v942 = vmul.f32 %v927, %v940
        %v943 = vld [vmem:[%s551] sm:$0xff]
        %v944 = vld [vmem:[%s551 + $0x8] sm:$0xff]
        %v945 = vld [vmem:[%s551 + $0x10] sm:$0xff]
        %v946 = vld [vmem:[%s551 + $0x18] sm:$0xff]
        %v947 = vld [vmem:[%s551 + $0x20] sm:$0xff]
        %v948 = vld [vmem:[%s551 + $0x28] sm:$0xff]
        %v949 = vld [vmem:[%s551 + $0x30] sm:$0xff]
        %v950 = vld [vmem:[%s551 + $0x38] sm:$0xff]
        %v951 = vld [vmem:[%s551 + $0x40] sm:$0xff]
        %v952 = vld [vmem:[%s551 + $0x48] sm:$0xff]
        %v953 = vld [vmem:[%s551 + $0x50] sm:$0xff]
        %v954 = vld [vmem:[%s551 + $0x58] sm:$0xff]
        %v955 = vld [vmem:[%s551 + $0x60] sm:$0xff]
        %v956 = vld [vmem:[%s551 + $0x68] sm:$0xff]
        %v957 = vld [vmem:[%s551 + $0x70] sm:$0xff]
        %v958 = vld [vmem:[%s551 + $0x78] sm:$0xff]
        %v959 = vld [vmem:[%s551 + $0x80] sm:$0xff]
        %v960 = vld [vmem:[%s551 + $0x88] sm:$0xff]
        %v961 = vld [vmem:[%s551 + $0x90] sm:$0xff]
        %v962 = vld [vmem:[%s551 + $0x98] sm:$0xff]
        %v963 = vld [vmem:[%s551 + $0xa0] sm:$0xff]
        %v964 = vld [vmem:[%s551 + $0xa8] sm:$0xff]
        %v965 = vld [vmem:[%s551 + $0xb0] sm:$0xff]
        %v966 = vld [vmem:[%s551 + $0xb8] sm:$0xff]
        %v967 = vld [vmem:[%s551 + $0xc0] sm:$0xff]
        %v968 = vld [vmem:[%s551 + $0xc8] sm:$0xff]
        %v969 = vld [vmem:[%s551 + $0xd0] sm:$0xff]
        %v970 = vld [vmem:[%s551 + $0xd8] sm:$0xff]
        %v971 = vld [vmem:[%s551 + $0xe0] sm:$0xff]
        %v972 = vld [vmem:[%s551 + $0xe8] sm:$0xff]
        %v973 = vld [vmem:[%s551 + $0xf0] sm:$0xff]
        %v974 = vld [vmem:[%s551 + $0xf8] sm:$0xff]
        %v975 = vld [vmem:[%s551 + $0x100] sm:$0xff]
        %v976 = vld [vmem:[%s551 + $0x108] sm:$0xff]
        %v977 = vld [vmem:[%s551 + $0x110] sm:$0xff]
        %v978 = vld [vmem:[%s551 + $0x118] sm:$0xff]
        %v979 = vld [vmem:[%s551 + $0x120] sm:$0xff]
        %v980 = vld [vmem:[%s551 + $0x128] sm:$0xff]
        %v981 = vld [vmem:[%s551 + $0x130] sm:$0xff]
        %v982 = vld [vmem:[%s551 + $0x138] sm:$0xff]
        %v983 = vld [vmem:[%s551 + $0x140] sm:$0xff]
        %v984 = vld [vmem:[%s551 + $0x148] sm:$0xff]
        %v985 = vld [vmem:[%s551 + $0x150] sm:$0xff]
        %v986 = vld [vmem:[%s551 + $0x158] sm:$0xff]
        %v987 = vld [vmem:[%s551 + $0x160] sm:$0xff]
        %v988 = vld [vmem:[%s551 + $0x168] sm:$0xff]
        %v989 = vld [vmem:[%s551 + $0x170] sm:$0xff]
        %v990 = vld [vmem:[%s551 + $0x178] sm:$0xff]
        %v991 = vld [vmem:[%s551 + $0x180] sm:$0xff]
        %v992 = vld [vmem:[%s551 + $0x188] sm:$0xff]
        %v993 = vld [vmem:[%s551 + $0x190] sm:$0xff]
        %v994 = vld [vmem:[%s551 + $0x198] sm:$0xff]
        %v995 = vld [vmem:[%s551 + $0x1a0] sm:$0xff]
        %v996 = vld [vmem:[%s551 + $0x1a8] sm:$0xff]
        %v997 = vld [vmem:[%s551 + $0x1b0] sm:$0xff]
        %v998 = vld [vmem:[%s551 + $0x1b8] sm:$0xff]
        %v999 = vld [vmem:[%s551 + $0x1c0] sm:$0xff]
        %v1000 = vld [vmem:[%s551 + $0x1c8] sm:$0xff]
        %v1001 = vld [vmem:[%s551 + $0x1d0] sm:$0xff]
        %v1002 = vld [vmem:[%s551 + $0x1d8] sm:$0xff]
        %v1003 = vld [vmem:[%s551 + $0x1e0] sm:$0xff]
        %v1004 = vld [vmem:[%s551 + $0x1e8] sm:$0xff]
        %v1005 = vld [vmem:[%s551 + $0x1f0] sm:$0xff]
        %v1006 = vld [vmem:[%s551 + $0x1f8] sm:$0xff]
        %v1007 = vld [vmem:[%s658] sm:$0x3]
        %v1009 = vlaneseq
        %v1010 = vshrl.u32 %v1009, 7
        %v1011 = vsub.s32 0, %v1010
        %v1012 = vrot.slane %v1007, %v1011
        %v1013 = vlaneseq
        %v1014 = vshrl.u32 %v1013, 7
        %v1015 = vsub.s32 1, %v1014
        %v1016 = vrot.slane %v1007, %v1015
        %1019 = vmatprep.subr.mxu0 %v944
        %1020 = vmatpush1.msra.mxu0 %v943
        %1021 = vmatprep.subr.mxu0 %v946
        %1022 = vmatpush1.msra.mxu0 %v945
        %1023 = vmatprep.subr.mxu0 %v948
        %1024 = vmatpush1.msra.mxu0 %v947
        %1025 = vmatprep.subr.mxu0 %v950
        %1026 = vmatpush1.msra.mxu0 %v949
        %1027 = vmatprep.subr.mxu0 %v952
        %1028 = vmatpush1.msra.mxu0 %v951
        %1029 = vmatprep.subr.mxu0 %v954
        %1030 = vmatpush1.msra.mxu0 %v953
        %1031 = vmatprep.subr.mxu0 %v956
        %1032 = vmatpush1.msra.mxu0 %v955
        %1033 = vmatprep.subr.mxu0 %v958
        %1034 = vmatpush1.msra.mxu0 %v957
        %1035 = vmatprep.subr.mxu0 %v960
        %1036 = vmatpush1.msra.mxu0 %v959
        %1037 = vmatprep.subr.mxu0 %v962
        %1038 = vmatpush1.msra.mxu0 %v961
        %1039 = vmatprep.subr.mxu0 %v964
        %1040 = vmatpush1.msra.mxu0 %v963
        %1041 = vmatprep.subr.mxu0 %v966
        %1042 = vmatpush1.msra.mxu0 %v965
        %1043 = vmatprep.subr.mxu0 %v968
        %1044 = vmatpush1.msra.mxu0 %v967
        %1045 = vmatprep.subr.mxu0 %v970
        %1046 = vmatpush1.msra.mxu0 %v969
        %1047 = vmatprep.subr.mxu0 %v972
        %1048 = vmatpush1.msra.mxu0 %v971
        %1049 = vmatprep.subr.mxu0 %v974
        %1050 = vmatpush1.msra.mxu0 %v973
        %1051 = vmatprep.subr.mxu0 %v976
        %1052 = vmatpush1.msra.mxu0 %v975
        %1053 = vmatprep.subr.mxu0 %v978
        %1054 = vmatpush1.msra.mxu0 %v977
        %1055 = vmatprep.subr.mxu0 %v980
        %1056 = vmatpush1.msra.mxu0 %v979
        %1057 = vmatprep.subr.mxu0 %v982
        %1058 = vmatpush1.msra.mxu0 %v981
        %1059 = vmatprep.subr.mxu0 %v984
        %1060 = vmatpush1.msra.mxu0 %v983
        %1061 = vmatprep.subr.mxu0 %v986
        %1062 = vmatpush1.msra.mxu0 %v985
        %1063 = vmatprep.subr.mxu0 %v988
        %1064 = vmatpush1.msra.mxu0 %v987
        %1065 = vmatprep.subr.mxu0 %v990
        %1066 = vmatpush1.msra.mxu0 %v989
        %1067 = vmatprep.subr.mxu0 %v992
        %1068 = vmatpush1.msra.mxu0 %v991
        %1069 = vmatprep.subr.mxu0 %v994
        %1070 = vmatpush1.msra.mxu0 %v993
        %1071 = vmatprep.subr.mxu0 %v996
        %1072 = vmatpush1.msra.mxu0 %v995
        %1073 = vmatprep.subr.mxu0 %v998
        %1074 = vmatpush1.msra.mxu0 %v997
        %1075 = vmatprep.subr.mxu0 %v1000
        %1076 = vmatpush1.msra.mxu0 %v999
        %1077 = vmatprep.subr.mxu0 %v1002
        %1078 = vmatpush1.msra.mxu0 %v1001
        %1079 = vmatprep.subr.mxu0 %v1004
        %1080 = vmatpush1.msra.mxu0 %v1003
        %1081 = vmatprep.subr.mxu0 %v1006
        %1082 = vmatpush1.msra.mxu0 %v1005
        %1083 = vmatprep.mubr.f32.mxu0 %v942
        %1084 = vmatmul.mubr.f32.gmra.mrb[0].mxu0 %v941
        %v1085 = vpop.f32.mrb[0].mxu0
        %v1086 = vadd.f32 %v1012, %v1085
        %v1087 = vpop.f32.mrb[0].mxu0
        %v1088 = vadd.f32 %v1016, %v1087
        %1089 = vdwg.mxu0
        %v1090 = vxor.u32 %v1086, 2147483648
        %v1091 = vxor.u32 %v1088, 2147483648
        %v1092 = vmul.f32 %v1090, 1.442695
        %v1093 = vpow.pop %v1092
        %v1094 = vmul.f32 %v1091, 1.442695
        %v1095 = vpow.pop %v1094
        %v1096 = vadd.f32 %v1093, 1.0
        %v1097 = vadd.f32 %v1095, 1.0
        %v1098 = vrcp.pop %v1096
        %v1099 = vmul.f32 1.0, %v1098
        %v1100 = vrcp.pop %v1097
        %v1101 = vmul.f32 1.0, %v1100
        %v1102 = vmul.f32 %v1086, %v1099
        %v1103 = vmul.f32 %v1088, %v1101
        %v1104 = vld [vmem:[%s560] sm:$0xff]
        %v1105 = vld [vmem:[%s560 + $0x8] sm:$0xff]
        %v1106 = vld [vmem:[%s560 + $0x10] sm:$0xff]
        %v1107 = vld [vmem:[%s560 + $0x18] sm:$0xff]
        %v1108 = vld [vmem:[%s560 + $0x20] sm:$0xff]
        %v1109 = vld [vmem:[%s560 + $0x28] sm:$0xff]
        %v1110 = vld [vmem:[%s560 + $0x30] sm:$0xff]
        %v1111 = vld [vmem:[%s560 + $0x38] sm:$0xff]
        %v1112 = vld [vmem:[%s560 + $0x40] sm:$0xff]
        %v1113 = vld [vmem:[%s560 + $0x48] sm:$0xff]
        %v1114 = vld [vmem:[%s560 + $0x50] sm:$0xff]
        %v1115 = vld [vmem:[%s560 + $0x58] sm:$0xff]
        %v1116 = vld [vmem:[%s560 + $0x60] sm:$0xff]
        %v1117 = vld [vmem:[%s560 + $0x68] sm:$0xff]
        %v1118 = vld [vmem:[%s560 + $0x70] sm:$0xff]
        %v1119 = vld [vmem:[%s560 + $0x78] sm:$0xff]
        %v1120 = vld [vmem:[%s560 + $0x80] sm:$0xff]
        %v1121 = vld [vmem:[%s560 + $0x88] sm:$0xff]
        %v1122 = vld [vmem:[%s560 + $0x90] sm:$0xff]
        %v1123 = vld [vmem:[%s560 + $0x98] sm:$0xff]
        %v1124 = vld [vmem:[%s560 + $0xa0] sm:$0xff]
        %v1125 = vld [vmem:[%s560 + $0xa8] sm:$0xff]
        %v1126 = vld [vmem:[%s560 + $0xb0] sm:$0xff]
        %v1127 = vld [vmem:[%s560 + $0xb8] sm:$0xff]
        %v1128 = vld [vmem:[%s560 + $0xc0] sm:$0xff]
        %v1129 = vld [vmem:[%s560 + $0xc8] sm:$0xff]
        %v1130 = vld [vmem:[%s560 + $0xd0] sm:$0xff]
        %v1131 = vld [vmem:[%s560 + $0xd8] sm:$0xff]
        %v1132 = vld [vmem:[%s560 + $0xe0] sm:$0xff]
        %v1133 = vld [vmem:[%s560 + $0xe8] sm:$0xff]
        %v1134 = vld [vmem:[%s560 + $0xf0] sm:$0xff]
        %v1135 = vld [vmem:[%s560 + $0xf8] sm:$0xff]
        %v1136 = vld [vmem:[%s664] sm:$0x1]
        %v1138 = vlaneseq
        %v1139 = vshrl.u32 %v1138, 7
        %v1140 = vsub.s32 0, %v1139
        %v1141 = vrot.slane %v1136, %v1140
        %1143 = vmatprep.subr.mxu0 0.0
        %1144 = vmatpush1.msra.mxu0 %v1104
        %1145 = vmatprep.subr.mxu0 0.0
        %1146 = vmatpush1.msra.mxu0 %v1105
        %1147 = vmatprep.subr.mxu0 0.0
        %1148 = vmatpush1.msra.mxu0 %v1106
        %1149 = vmatprep.subr.mxu0 0.0
        %1150 = vmatpush1.msra.mxu0 %v1107
        %1151 = vmatprep.subr.mxu0 0.0
        %1152 = vmatpush1.msra.mxu0 %v1108
        %1153 = vmatprep.subr.mxu0 0.0
        %1154 = vmatpush1.msra.mxu0 %v1109
        %1155 = vmatprep.subr.mxu0 0.0
        %1156 = vmatpush1.msra.mxu0 %v1110
        %1157 = vmatprep.subr.mxu0 0.0
        %1158 = vmatpush1.msra.mxu0 %v1111
        %1159 = vmatprep.subr.mxu0 0.0
        %1160 = vmatpush1.msra.mxu0 %v1112
        %1161 = vmatprep.subr.mxu0 0.0
        %1162 = vmatpush1.msra.mxu0 %v1113
        %1163 = vmatprep.subr.mxu0 0.0
        %1164 = vmatpush1.msra.mxu0 %v1114
        %1165 = vmatprep.subr.mxu0 0.0
        %1166 = vmatpush1.msra.mxu0 %v1115
        %1167 = vmatprep.subr.mxu0 0.0
        %1168 = vmatpush1.msra.mxu0 %v1116
        %1169 = vmatprep.subr.mxu0 0.0
        %1170 = vmatpush1.msra.mxu0 %v1117
        %1171 = vmatprep.subr.mxu0 0.0
        %1172 = vmatpush1.msra.mxu0 %v1118
        %1173 = vmatprep.subr.mxu0 0.0
        %1174 = vmatpush1.msra.mxu0 %v1119
        %1175 = vmatprep.subr.mxu0 0.0
        %1176 = vmatpush1.msra.mxu0 %v1120
        %1177 = vmatprep.subr.mxu0 0.0
        %1178 = vmatpush1.msra.mxu0 %v1121
        %1179 = vmatprep.subr.mxu0 0.0
        %1180 = vmatpush1.msra.mxu0 %v1122
        %1181 = vmatprep.subr.mxu0 0.0
        %1182 = vmatpush1.msra.mxu0 %v1123
        %1183 = vmatprep.subr.mxu0 0.0
        %1184 = vmatpush1.msra.mxu0 %v1124
        %1185 = vmatprep.subr.mxu0 0.0
        %1186 = vmatpush1.msra.mxu0 %v1125
        %1187 = vmatprep.subr.mxu0 0.0
        %1188 = vmatpush1.msra.mxu0 %v1126
        %1189 = vmatprep.subr.mxu0 0.0
        %1190 = vmatpush1.msra.mxu0 %v1127
        %1191 = vmatprep.subr.mxu0 0.0
        %1192 = vmatpush1.msra.mxu0 %v1128
        %1193 = vmatprep.subr.mxu0 0.0
        %1194 = vmatpush1.msra.mxu0 %v1129
        %1195 = vmatprep.subr.mxu0 0.0
        %1196 = vmatpush1.msra.mxu0 %v1130
        %1197 = vmatprep.subr.mxu0 0.0
        %1198 = vmatpush1.msra.mxu0 %v1131
        %1199 = vmatprep.subr.mxu0 0.0
        %1200 = vmatpush1.msra.mxu0 %v1132
        %1201 = vmatprep.subr.mxu0 0.0
        %1202 = vmatpush1.msra.mxu0 %v1133
        %1203 = vmatprep.subr.mxu0 0.0
        %1204 = vmatpush1.msra.mxu0 %v1134
        %1205 = vmatprep.subr.mxu0 0.0
        %1206 = vmatpush1.msra.mxu0 %v1135
        %1207 = vmatprep.mubr.f32.mxu0 %v1103
        %1208 = vmatmul.mubr.f32.gmra.mrb[0].mxu0 %v1102
        %v1209 = vpop.f32.mrb[0].mxu0
        %v1210 = vadd.f32 %v1141, %v1209
        %v1211 = vpop.f32.mrb[0].mxu0
        %1212 = vdwg.mxu0
        %v1214 = vlaneseq
        %v1215 = vshrl.u32 %v1214, 7
        %v1216 = vsub.s32 0, %v1215
        %v1217 = vrot.slane %v667, %v1216
        %v1219 = vsub.f32 %v1217, %v1210
        %v1220 = vmax.f32 %v1219, 0.0
        %vm1221 = vcmp.ne.f32.partialorder %v1219, %v1219
        %v1222 = vadd.f32 %v1219, 0.0
        %v1223 = vand.u32 2147483647, %v1219
        %v1224 = vsub.f32 0.0, %v1223
        %v1225 = vmul.f32 %v1224, 1.442695
        %v1226 = vpow.pop %v1225
        %v1227 = vadd.f32 %v1226, 1.0
        %v1228 = vlog2.pop %v1227
        %v1229 = vmul.f32 %v1228, 0.6931472
        %v1230 = vmul.f32 -0.5, %v1226
        %v1231 = vadd.f32 %v1230, 1.0
        %v1232 = vmul.f32 %v1231, %v1226
        %v1233 = vand.u32 2147483647, %v1226
        %vm1234 = vcmp.lt.f32.partialorder %v1233, 0.0004427343
        %v1235 = vsel %vm1234, %v1232, %v1229
        %v1236 = vadd.f32 %v1220, %v1235
        %v1237 = vsel %vm1221, %v1222, %v1236
        %v1238 = vsub.f32 %v1217, %v1237
        %v1240 = vlaneseq
        %v1241 = vshrl.u32 %v1240, 7
        %v1242 = vsub.s32 0, %v1241
        %v1243 = vrot.slane %v668, %v1242
        %v1245 = vsub.f32 %v1238, %v1243
        %v1246 = vmax.f32 %v1245, 0.0
        %vm1247 = vcmp.ne.f32.partialorder %v1245, %v1245
        %v1248 = vadd.f32 %v1245, 0.0
        %v1249 = vand.u32 2147483647, %v1245
        %v1250 = vsub.f32 0.0, %v1249
        %v1251 = vmul.f32 %v1250, 1.442695
        %v1252 = vpow.pop %v1251
        %v1253 = vadd.f32 %v1252, 1.0
        %v1254 = vlog2.pop %v1253
        %v1255 = vmul.f32 %v1254, 0.6931472
        %v1256 = vmul.f32 -0.5, %v1252
        %v1257 = vadd.f32 %v1256, 1.0
        %v1258 = vmul.f32 %v1257, %v1252
        %v1259 = vand.u32 2147483647, %v1252
        %vm1260 = vcmp.lt.f32.partialorder %v1259, 0.0004427343
        %v1261 = vsel %vm1260, %v1258, %v1255
        %v1262 = vadd.f32 %v1246, %v1261
        %v1263 = vsel %vm1247, %v1248, %v1262
        %v1264 = vadd.f32 %v1243, %v1263
        %v1265 = vsel %vm671, 1, 0
        %vm1266 = vcmp.eq.s32.totalorder %v1265, 1
        %v1267 = vsel %vm1266, %v1210, %v1264
        %1268 = vst [vmem:[%s637] sm:$0xff] %v1267
        %s1269 = scalar_lea.vmem %s524, 8 [#allocation5]
        %v1270 = vld [vmem:[%s1269] sm:$0xff]
        %s1271 = scalar_lea.vmem %s533, 64 [#allocation7]
        %v1272 = vld [vmem:[%s1271] sm:$0xff]
        %v1273 = vld [vmem:[%s1271 + $0x8] sm:$0xff]
        %v1274 = vld [vmem:[%s1271 + $0x10] sm:$0xff]
        %v1275 = vld [vmem:[%s1271 + $0x18] sm:$0xff]
        %v1276 = vld [vmem:[%s1271 + $0x20] sm:$0xff]
        %v1277 = vld [vmem:[%s1271 + $0x28] sm:$0xff]
        %v1278 = vld [vmem:[%s1271 + $0x30] sm:$0xff]
        %v1279 = vld [vmem:[%s1271 + $0x38] sm:$0xff]
        %s1280 = scalar_lea.vmem %s644, 2
        %v1281 = vld [vmem:[%s1280] sm:$0x3]
        %v1283 = vlaneseq
        %v1284 = vshrl.u32 %v1283, 7
        %v1285 = vsub.s32 0, %v1284
        %v1286 = vrot.slane %v1281, %v1285
        %v1287 = vlaneseq
        %v1288 = vshrl.u32 %v1287, 7
        %v1289 = vsub.s32 1, %v1288
        %v1290 = vrot.slane %v1281, %v1289
        %v1294 = vsel %vm693, %v1270, 0
        %1296 = vmatprep.subr.mxu0 %v1273
        %1297 = vmatpush1.msra.mxu0 %v1272
        %1298 = vmatprep.subr.mxu0 %v1275
        %1299 = vmatpush1.msra.mxu0 %v1274
        %1300 = vmatprep.subr.mxu0 %v1277
        %1301 = vmatpush1.msra.mxu0 %v1276
        %1302 = vmatprep.subr.mxu0 %v1279
        %1303 = vmatpush1.msra.mxu0 %v1278
        %1304 = vmatprep.subr.mxu0 0.0
        %1305 = vmatpush1.msra.mxu0 0.0
        %1306 = vmatprep.subr.mxu0 0.0
        %1307 = vmatpush1.msra.mxu0 0.0
        %1308 = vmatprep.subr.mxu0 0.0
        %1309 = vmatpush1.msra.mxu0 0.0
        %1310 = vmatprep.subr.mxu0 0.0
        %1311 = vmatpush1.msra.mxu0 0.0
        %1312 = vmatprep.subr.mxu0 0.0
        %1313 = vmatpush1.msra.mxu0 0.0
        %1314 = vmatprep.subr.mxu0 0.0
        %1315 = vmatpush1.msra.mxu0 0.0
        %1316 = vmatprep.subr.mxu0 0.0
        %1317 = vmatpush1.msra.mxu0 0.0
        %1318 = vmatprep.subr.mxu0 0.0
        %1319 = vmatpush1.msra.mxu0 0.0
        %1320 = vmatprep.subr.mxu0 0.0
        %1321 = vmatpush1.msra.mxu0 0.0
        %1322 = vmatprep.subr.mxu0 0.0
        %1323 = vmatpush1.msra.mxu0 0.0
        %1324 = vmatprep.subr.mxu0 0.0
        %1325 = vmatpush1.msra.mxu0 0.0
        %1326 = vmatprep.subr.mxu0 0.0
        %1327 = vmatpush1.msra.mxu0 0.0
        %1328 = vmatprep.subr.mxu0 0.0
        %1329 = vmatpush1.msra.mxu0 0.0
        %1330 = vmatprep.subr.mxu0 0.0
        %1331 = vmatpush1.msra.mxu0 0.0
        %1332 = vmatprep.subr.mxu0 0.0
        %1333 = vmatpush1.msra.mxu0 0.0
        %1334 = vmatprep.subr.mxu0 0.0
        %1335 = vmatpush1.msra.mxu0 0.0
        %1336 = vmatprep.subr.mxu0 0.0
        %1337 = vmatpush1.msra.mxu0 0.0
        %1338 = vmatprep.subr.mxu0 0.0
        %1339 = vmatpush1.msra.mxu0 0.0
        %1340 = vmatprep.subr.mxu0 0.0
        %1341 = vmatpush1.msra.mxu0 0.0
        %1342 = vmatprep.subr.mxu0 0.0
        %1343 = vmatpush1.msra.mxu0 0.0
        %1344 = vmatprep.subr.mxu0 0.0
        %1345 = vmatpush1.msra.mxu0 0.0
        %1346 = vmatprep.subr.mxu0 0.0
        %1347 = vmatpush1.msra.mxu0 0.0
        %1348 = vmatprep.subr.mxu0 0.0
        %1349 = vmatpush1.msra.mxu0 0.0
        %1350 = vmatprep.subr.mxu0 0.0
        %1351 = vmatpush1.msra.mxu0 0.0
        %1352 = vmatprep.subr.mxu0 0.0
        %1353 = vmatpush1.msra.mxu0 0.0
        %1354 = vmatprep.subr.mxu0 0.0
        %1355 = vmatpush1.msra.mxu0 0.0
        %1356 = vmatprep.subr.mxu0 0.0
        %1357 = vmatpush1.msra.mxu0 0.0
        %1358 = vmatprep.subr.mxu0 0.0
        %1359 = vmatpush1.msra.mxu0 0.0
        %1360 = vmatprep.mubr.f32.mxu0 0.0
        %1361 = vmatmul.mubr.f32.gmra.mrb[0].mxu0 %v1294
        %v1362 = vpop.f32.mrb[0].mxu0
        %v1363 = vadd.f32 %v1286, %v1362
        %v1364 = vpop.f32.mrb[0].mxu0
        %v1365 = vadd.f32 %v1290, %v1364
        %1366 = vdwg.mxu0
        %v1367 = vxor.u32 %v1363, 2147483648
        %v1368 = vxor.u32 %v1365, 2147483648
        %v1369 = vmul.f32 %v1367, 1.442695
        %v1370 = vpow.pop %v1369
        %v1371 = vmul.f32 %v1368, 1.442695
        %v1372 = vpow.pop %v1371
        %v1373 = vadd.f32 %v1370, 1.0
        %v1374 = vadd.f32 %v1372, 1.0
        %v1375 = vrcp.pop %v1373
        %v1376 = vmul.f32 1.0, %v1375
        %v1377 = vrcp.pop %v1374
        %v1378 = vmul.f32 1.0, %v1377
        %v1379 = vmul.f32 %v1363, %v1376
        %v1380 = vmul.f32 %v1365, %v1378
        %s1381 = scalar_lea.vmem %s542, 512 [#allocation8]
        %v1382 = vld [vmem:[%s1381] sm:$0xff]
        %v1383 = vld [vmem:[%s1381 + $0x8] sm:$0xff]
        %v1384 = vld [vmem:[%s1381 + $0x10] sm:$0xff]
        %v1385 = vld [vmem:[%s1381 + $0x18] sm:$0xff]
        %v1386 = vld [vmem:[%s1381 + $0x20] sm:$0xff]
        %v1387 = vld [vmem:[%s1381 + $0x28] sm:$0xff]
        %v1388 = vld [vmem:[%s1381 + $0x30] sm:$0xff]
        %v1389 = vld [vmem:[%s1381 + $0x38] sm:$0xff]
        %v1390 = vld [vmem:[%s1381 + $0x40] sm:$0xff]
        %v1391 = vld [vmem:[%s1381 + $0x48] sm:$0xff]
        %v1392 = vld [vmem:[%s1381 + $0x50] sm:$0xff]
        %v1393 = vld [vmem:[%s1381 + $0x58] sm:$0xff]
        %v1394 = vld [vmem:[%s1381 + $0x60] sm:$0xff]
        %v1395 = vld [vmem:[%s1381 + $0x68] sm:$0xff]
        %v1396 = vld [vmem:[%s1381 + $0x70] sm:$0xff]
        %v1397 = vld [vmem:[%s1381 + $0x78] sm:$0xff]
        %v1398 = vld [vmem:[%s1381 + $0x80] sm:$0xff]
        %v1399 = vld [vmem:[%s1381 + $0x88] sm:$0xff]
        %v1400 = vld [vmem:[%s1381 + $0x90] sm:$0xff]
        %v1401 = vld [vmem:[%s1381 + $0x98] sm:$0xff]
        %v1402 = vld [vmem:[%s1381 + $0xa0] sm:$0xff]
        %v1403 = vld [vmem:[%s1381 + $0xa8] sm:$0xff]
        %v1404 = vld [vmem:[%s1381 + $0xb0] sm:$0xff]
        %v1405 = vld [vmem:[%s1381 + $0xb8] sm:$0xff]
        %v1406 = vld [vmem:[%s1381 + $0xc0] sm:$0xff]
        %v1407 = vld [vmem:[%s1381 + $0xc8] sm:$0xff]
        %v1408 = vld [vmem:[%s1381 + $0xd0] sm:$0xff]
        %v1409 = vld [vmem:[%s1381 + $0xd8] sm:$0xff]
        %v1410 = vld [vmem:[%s1381 + $0xe0] sm:$0xff]
        %v1411 = vld [vmem:[%s1381 + $0xe8] sm:$0xff]
        %v1412 = vld [vmem:[%s1381 + $0xf0] sm:$0xff]
        %v1413 = vld [vmem:[%s1381 + $0xf8] sm:$0xff]
        %v1414 = vld [vmem:[%s1381 + $0x100] sm:$0xff]
        %v1415 = vld [vmem:[%s1381 + $0x108] sm:$0xff]
        %v1416 = vld [vmem:[%s1381 + $0x110] sm:$0xff]
        %v1417 = vld [vmem:[%s1381 + $0x118] sm:$0xff]
        %v1418 = vld [vmem:[%s1381 + $0x120] sm:$0xff]
        %v1419 = vld [vmem:[%s1381 + $0x128] sm:$0xff]
        %v1420 = vld [vmem:[%s1381 + $0x130] sm:$0xff]
        %v1421 = vld [vmem:[%s1381 + $0x138] sm:$0xff]
        %v1422 = vld [vmem:[%s1381 + $0x140] sm:$0xff]
        %v1423 = vld [vmem:[%s1381 + $0x148] sm:$0xff]
        %v1424 = vld [vmem:[%s1381 + $0x150] sm:$0xff]
        %v1425 = vld [vmem:[%s1381 + $0x158] sm:$0xff]
        %v1426 = vld [vmem:[%s1381 + $0x160] sm:$0xff]
        %v1427 = vld [vmem:[%s1381 + $0x168] sm:$0xff]
        %v1428 = vld [vmem:[%s1381 + $0x170] sm:$0xff]
        %v1429 = vld [vmem:[%s1381 + $0x178] sm:$0xff]
        %v1430 = vld [vmem:[%s1381 + $0x180] sm:$0xff]
        %v1431 = vld [vmem:[%s1381 + $0x188] sm:$0xff]
        %v1432 = vld [vmem:[%s1381 + $0x190] sm:$0xff]
        %v1433 = vld [vmem:[%s1381 + $0x198] sm:$0xff]
        %v1434 = vld [vmem:[%s1381 + $0x1a0] sm:$0xff]
        %v1435 = vld [vmem:[%s1381 + $0x1a8] sm:$0xff]
        %v1436 = vld [vmem:[%s1381 + $0x1b0] sm:$0xff]
        %v1437 = vld [vmem:[%s1381 + $0x1b8] sm:$0xff]
        %v1438 = vld [vmem:[%s1381 + $0x1c0] sm:$0xff]
        %v1439 = vld [vmem:[%s1381 + $0x1c8] sm:$0xff]
        %v1440 = vld [vmem:[%s1381 + $0x1d0] sm:$0xff]
        %v1441 = vld [vmem:[%s1381 + $0x1d8] sm:$0xff]
        %v1442 = vld [vmem:[%s1381 + $0x1e0] sm:$0xff]
        %v1443 = vld [vmem:[%s1381 + $0x1e8] sm:$0xff]
        %v1444 = vld [vmem:[%s1381 + $0x1f0] sm:$0xff]
        %v1445 = vld [vmem:[%s1381 + $0x1f8] sm:$0xff]
        %s1446 = scalar_lea.vmem %s651, 2
        %v1447 = vld [vmem:[%s1446] sm:$0x3]
        %v1449 = vlaneseq
        %v1450 = vshrl.u32 %v1449, 7
        %v1451 = vsub.s32 0, %v1450
        %v1452 = vrot.slane %v1447, %v1451
        %v1453 = vlaneseq
        %v1454 = vshrl.u32 %v1453, 7
        %v1455 = vsub.s32 1, %v1454
        %v1456 = vrot.slane %v1447, %v1455
        %1459 = vmatprep.subr.mxu0 %v1383
        %1460 = vmatpush1.msra.mxu0 %v1382
        %1461 = vmatprep.subr.mxu0 %v1385
        %1462 = vmatpush1.msra.mxu0 %v1384
        %1463 = vmatprep.subr.mxu0 %v1387
        %1464 = vmatpush1.msra.mxu0 %v1386
        %1465 = vmatprep.subr.mxu0 %v1389
        %1466 = vmatpush1.msra.mxu0 %v1388
        %1467 = vmatprep.subr.mxu0 %v1391
        %1468 = vmatpush1.msra.mxu0 %v1390
        %1469 = vmatprep.subr.mxu0 %v1393
        %1470 = vmatpush1.msra.mxu0 %v1392
        %1471 = vmatprep.subr.mxu0 %v1395
        %1472 = vmatpush1.msra.mxu0 %v1394
        %1473 = vmatprep.subr.mxu0 %v1397
        %1474 = vmatpush1.msra.mxu0 %v1396
        %1475 = vmatprep.subr.mxu0 %v1399
        %1476 = vmatpush1.msra.mxu0 %v1398
        %1477 = vmatprep.subr.mxu0 %v1401
        %1478 = vmatpush1.msra.mxu0 %v1400
        %1479 = vmatprep.subr.mxu0 %v1403
        %1480 = vmatpush1.msra.mxu0 %v1402
        %1481 = vmatprep.subr.mxu0 %v1405
        %1482 = vmatpush1.msra.mxu0 %v1404
        %1483 = vmatprep.subr.mxu0 %v1407
        %1484 = vmatpush1.msra.mxu0 %v1406
        %1485 = vmatprep.subr.mxu0 %v1409
        %1486 = vmatpush1.msra.mxu0 %v1408
        %1487 = vmatprep.subr.mxu0 %v1411
        %1488 = vmatpush1.msra.mxu0 %v1410
        %1489 = vmatprep.subr.mxu0 %v1413
        %1490 = vmatpush1.msra.mxu0 %v1412
        %1491 = vmatprep.subr.mxu0 %v1415
        %1492 = vmatpush1.msra.mxu0 %v1414
        %1493 = vmatprep.subr.mxu0 %v1417
        %1494 = vmatpush1.msra.mxu0 %v1416
        %1495 = vmatprep.subr.mxu0 %v1419
        %1496 = vmatpush1.msra.mxu0 %v1418
        %1497 = vmatprep.subr.mxu0 %v1421
        %1498 = vmatpush1.msra.mxu0 %v1420
        %1499 = vmatprep.subr.mxu0 %v1423
        %1500 = vmatpush1.msra.mxu0 %v1422
        %1501 = vmatprep.subr.mxu0 %v1425
        %1502 = vmatpush1.msra.mxu0 %v1424
        %1503 = vmatprep.subr.mxu0 %v1427
        %1504 = vmatpush1.msra.mxu0 %v1426
        %1505 = vmatprep.subr.mxu0 %v1429
        %1506 = vmatpush1.msra.mxu0 %v1428
        %1507 = vmatprep.subr.mxu0 %v1431
        %1508 = vmatpush1.msra.mxu0 %v1430
        %1509 = vmatprep.subr.mxu0 %v1433
        %1510 = vmatpush1.msra.mxu0 %v1432
        %1511 = vmatprep.subr.mxu0 %v1435
        %1512 = vmatpush1.msra.mxu0 %v1434
        %1513 = vmatprep.subr.mxu0 %v1437
        %1514 = vmatpush1.msra.mxu0 %v1436
        %1515 = vmatprep.subr.mxu0 %v1439
        %1516 = vmatpush1.msra.mxu0 %v1438
        %1517 = vmatprep.subr.mxu0 %v1441
        %1518 = vmatpush1.msra.mxu0 %v1440
        %1519 = vmatprep.subr.mxu0 %v1443
        %1520 = vmatpush1.msra.mxu0 %v1442
        %1521 = vmatprep.subr.mxu0 %v1445
        %1522 = vmatpush1.msra.mxu0 %v1444
        %1523 = vmatprep.mubr.f32.mxu0 %v1380
        %1524 = vmatmul.mubr.f32.gmra.mrb[0].mxu0 %v1379
        %v1525 = vpop.f32.mrb[0].mxu0
        %v1526 = vadd.f32 %v1452, %v1525
        %v1527 = vpop.f32.mrb[0].mxu0
        %v1528 = vadd.f32 %v1456, %v1527
        %1529 = vdwg.mxu0
        %v1530 = vxor.u32 %v1526, 2147483648
        %v1531 = vxor.u32 %v1528, 2147483648
        %v1532 = vmul.f32 %v1530, 1.442695
        %v1533 = vpow.pop %v1532
        %v1534 = vmul.f32 %v1531, 1.442695
        %v1535 = vpow.pop %v1534
        %v1536 = vadd.f32 %v1533, 1.0
        %v1537 = vadd.f32 %v1535, 1.0
        %v1538 = vrcp.pop %v1536
        %v1539 = vmul.f32 1.0, %v1538
        %v1540 = vrcp.pop %v1537
        %v1541 = vmul.f32 1.0, %v1540
        %v1542 = vmul.f32 %v1526, %v1539
        %v1543 = vmul.f32 %v1528, %v1541
        %s1544 = scalar_lea.vmem %s551, 512 [#allocation10]
        %v1545 = vld [vmem:[%s1544] sm:$0xff]
        %v1546 = vld [vmem:[%s1544 + $0x8] sm:$0xff]
        %v1547 = vld [vmem:[%s1544 + $0x10] sm:$0xff]
        %v1548 = vld [vmem:[%s1544 + $0x18] sm:$0xff]
        %v1549 = vld [vmem:[%s1544 + $0x20] sm:$0xff]
        %v1550 = vld [vmem:[%s1544 + $0x28] sm:$0xff]
        %v1551 = vld [vmem:[%s1544 + $0x30] sm:$0xff]
        %v1552 = vld [vmem:[%s1544 + $0x38] sm:$0xff]
        %v1553 = vld [vmem:[%s1544 + $0x40] sm:$0xff]
        %v1554 = vld [vmem:[%s1544 + $0x48] sm:$0xff]
        %v1555 = vld [vmem:[%s1544 + $0x50] sm:$0xff]
        %v1556 = vld [vmem:[%s1544 + $0x58] sm:$0xff]
        %v1557 = vld [vmem:[%s1544 + $0x60] sm:$0xff]
        %v1558 = vld [vmem:[%s1544 + $0x68] sm:$0xff]
        %v1559 = vld [vmem:[%s1544 + $0x70] sm:$0xff]
        %v1560 = vld [vmem:[%s1544 + $0x78] sm:$0xff]
        %v1561 = vld [vmem:[%s1544 + $0x80] sm:$0xff]
        %v1562 = vld [vmem:[%s1544 + $0x88] sm:$0xff]
        %v1563 = vld [vmem:[%s1544 + $0x90] sm:$0xff]
        %v1564 = vld [vmem:[%s1544 + $0x98] sm:$0xff]
        %v1565 = vld [vmem:[%s1544 + $0xa0] sm:$0xff]
        %v1566 = vld [vmem:[%s1544 + $0xa8] sm:$0xff]
        %v1567 = vld [vmem:[%s1544 + $0xb0] sm:$0xff]
        %v1568 = vld [vmem:[%s1544 + $0xb8] sm:$0xff]
        %v1569 = vld [vmem:[%s1544 + $0xc0] sm:$0xff]
        %v1570 = vld [vmem:[%s1544 + $0xc8] sm:$0xff]
        %v1571 = vld [vmem:[%s1544 + $0xd0] sm:$0xff]
        %v1572 = vld [vmem:[%s1544 + $0xd8] sm:$0xff]
        %v1573 = vld [vmem:[%s1544 + $0xe0] sm:$0xff]
        %v1574 = vld [vmem:[%s1544 + $0xe8] sm:$0xff]
        %v1575 = vld [vmem:[%s1544 + $0xf0] sm:$0xff]
        %v1576 = vld [vmem:[%s1544 + $0xf8] sm:$0xff]
        %v1577 = vld [vmem:[%s1544 + $0x100] sm:$0xff]
        %v1578 = vld [vmem:[%s1544 + $0x108] sm:$0xff]
        %v1579 = vld [vmem:[%s1544 + $0x110] sm:$0xff]
        %v1580 = vld [vmem:[%s1544 + $0x118] sm:$0xff]
        %v1581 = vld [vmem:[%s1544 + $0x120] sm:$0xff]
        %v1582 = vld [vmem:[%s1544 + $0x128] sm:$0xff]
        %v1583 = vld [vmem:[%s1544 + $0x130] sm:$0xff]
        %v1584 = vld [vmem:[%s1544 + $0x138] sm:$0xff]
        %v1585 = vld [vmem:[%s1544 + $0x140] sm:$0xff]
        %v1586 = vld [vmem:[%s1544 + $0x148] sm:$0xff]
        %v1587 = vld [vmem:[%s1544 + $0x150] sm:$0xff]
        %v1588 = vld [vmem:[%s1544 + $0x158] sm:$0xff]
        %v1589 = vld [vmem:[%s1544 + $0x160] sm:$0xff]
        %v1590 = vld [vmem:[%s1544 + $0x168] sm:$0xff]
        %v1591 = vld [vmem:[%s1544 + $0x170] sm:$0xff]
        %v1592 = vld [vmem:[%s1544 + $0x178] sm:$0xff]
        %v1593 = vld [vmem:[%s1544 + $0x180] sm:$0xff]
        %v1594 = vld [vmem:[%s1544 + $0x188] sm:$0xff]
        %v1595 = vld [vmem:[%s1544 + $0x190] sm:$0xff]
        %v1596 = vld [vmem:[%s1544 + $0x198] sm:$0xff]
        %v1597 = vld [vmem:[%s1544 + $0x1a0] sm:$0xff]
        %v1598 = vld [vmem:[%s1544 + $0x1a8] sm:$0xff]
        %v1599 = vld [vmem:[%s1544 + $0x1b0] sm:$0xff]
        %v1600 = vld [vmem:[%s1544 + $0x1b8] sm:$0xff]
        %v1601 = vld [vmem:[%s1544 + $0x1c0] sm:$0xff]
        %v1602 = vld [vmem:[%s1544 + $0x1c8] sm:$0xff]
        %v1603 = vld [vmem:[%s1544 + $0x1d0] sm:$0xff]
        %v1604 = vld [vmem:[%s1544 + $0x1d8] sm:$0xff]
        %v1605 = vld [vmem:[%s1544 + $0x1e0] sm:$0xff]
        %v1606 = vld [vmem:[%s1544 + $0x1e8] sm:$0xff]
        %v1607 = vld [vmem:[%s1544 + $0x1f0] sm:$0xff]
        %v1608 = vld [vmem:[%s1544 + $0x1f8] sm:$0xff]
        %s1609 = scalar_lea.vmem %s658, 2
        %v1610 = vld [vmem:[%s1609] sm:$0x3]
        %v1612 = vlaneseq
        %v1613 = vshrl.u32 %v1612, 7
        %v1614 = vsub.s32 0, %v1613
        %v1615 = vrot.slane %v1610, %v1614
        %v1616 = vlaneseq
        %v1617 = vshrl.u32 %v1616, 7
        %v1618 = vsub.s32 1, %v1617
        %v1619 = vrot.slane %v1610, %v1618
        %1622 = vmatprep.subr.mxu0 %v1546
        %1623 = vmatpush1.msra.mxu0 %v1545
        %1624 = vmatprep.subr.mxu0 %v1548
        %1625 = vmatpush1.msra.mxu0 %v1547
        %1626 = vmatprep.subr.mxu0 %v1550
        %1627 = vmatpush1.msra.mxu0 %v1549
        %1628 = vmatprep.subr.mxu0 %v1552
        %1629 = vmatpush1.msra.mxu0 %v1551
        %1630 = vmatprep.subr.mxu0 %v1554
        %1631 = vmatpush1.msra.mxu0 %v1553
        %1632 = vmatprep.subr.mxu0 %v1556
        %1633 = vmatpush1.msra.mxu0 %v1555
        %1634 = vmatprep.subr.mxu0 %v1558
        %1635 = vmatpush1.msra.mxu0 %v1557
        %1636 = vmatprep.subr.mxu0 %v1560
        %1637 = vmatpush1.msra.mxu0 %v1559
        %1638 = vmatprep.subr.mxu0 %v1562
        %1639 = vmatpush1.msra.mxu0 %v1561
        %1640 = vmatprep.subr.mxu0 %v1564
        %1641 = vmatpush1.msra.mxu0 %v1563
        %1642 = vmatprep.subr.mxu0 %v1566
        %1643 = vmatpush1.msra.mxu0 %v1565
        %1644 = vmatprep.subr.mxu0 %v1568
        %1645 = vmatpush1.msra.mxu0 %v1567
        %1646 = vmatprep.subr.mxu0 %v1570
        %1647 = vmatpush1.msra.mxu0 %v1569
        %1648 = vmatprep.subr.mxu0 %v1572
        %1649 = vmatpush1.msra.mxu0 %v1571
        %1650 = vmatprep.subr.mxu0 %v1574
        %1651 = vmatpush1.msra.mxu0 %v1573
        %1652 = vmatprep.subr.mxu0 %v1576
        %1653 = vmatpush1.msra.mxu0 %v1575
        %1654 = vmatprep.subr.mxu0 %v1578
        %1655 = vmatpush1.msra.mxu0 %v1577
        %1656 = vmatprep.subr.mxu0 %v1580
        %1657 = vmatpush1.msra.mxu0 %v1579
        %1658 = vmatprep.subr.mxu0 %v1582
        %1659 = vmatpush1.msra.mxu0 %v1581
        %1660 = vmatprep.subr.mxu0 %v1584
        %1661 = vmatpush1.msra.mxu0 %v1583
        %1662 = vmatprep.subr.mxu0 %v1586
        %1663 = vmatpush1.msra.mxu0 %v1585
        %1664 = vmatprep.subr.mxu0 %v1588
        %1665 = vmatpush1.msra.mxu0 %v1587
        %1666 = vmatprep.subr.mxu0 %v1590
        %1667 = vmatpush1.msra.mxu0 %v1589
        %1668 = vmatprep.subr.mxu0 %v1592
        %1669 = vmatpush1.msra.mxu0 %v1591
        %1670 = vmatprep.subr.mxu0 %v1594
        %1671 = vmatpush1.msra.mxu0 %v1593
        %1672 = vmatprep.subr.mxu0 %v1596
        %1673 = vmatpush1.msra.mxu0 %v1595
        %1674 = vmatprep.subr.mxu0 %v1598
        %1675 = vmatpush1.msra.mxu0 %v1597
        %1676 = vmatprep.subr.mxu0 %v1600
        %1677 = vmatpush1.msra.mxu0 %v1599
        %1678 = vmatprep.subr.mxu0 %v1602
        %1679 = vmatpush1.msra.mxu0 %v1601
        %1680 = vmatprep.subr.mxu0 %v1604
        %1681 = vmatpush1.msra.mxu0 %v1603
        %1682 = vmatprep.subr.mxu0 %v1606
        %1683 = vmatpush1.msra.mxu0 %v1605
        %1684 = vmatprep.subr.mxu0 %v1608
        %1685 = vmatpush1.msra.mxu0 %v1607
        %1686 = vmatprep.mubr.f32.mxu0 %v1543
        %1687 = vmatmul.mubr.f32.gmra.mrb[0].mxu0 %v1542
        %v1688 = vpop.f32.mrb[0].mxu0
        %v1689 = vadd.f32 %v1615, %v1688
        %v1690 = vpop.f32.mrb[0].mxu0
        %v1691 = vadd.f32 %v1619, %v1690
        %1692 = vdwg.mxu0
        %v1693 = vxor.u32 %v1689, 2147483648
        %v1694 = vxor.u32 %v1691, 2147483648
        %v1695 = vmul.f32 %v1693, 1.442695
        %v1696 = vpow.pop %v1695
        %v1697 = vmul.f32 %v1694, 1.442695
        %v1698 = vpow.pop %v1697
        %v1699 = vadd.f32 %v1696, 1.0
        %v1700 = vadd.f32 %v1698, 1.0
        %v1701 = vrcp.pop %v1699
        %v1702 = vmul.f32 1.0, %v1701
        %v1703 = vrcp.pop %v1700
        %v1704 = vmul.f32 1.0, %v1703
        %v1705 = vmul.f32 %v1689, %v1702
        %v1706 = vmul.f32 %v1691, %v1704
        %s1707 = scalar_lea.vmem %s560, 256 [#allocation11]
        %v1708 = vld [vmem:[%s1707] sm:$0xff]
        %v1709 = vld [vmem:[%s1707 + $0x8] sm:$0xff]
        %v1710 = vld [vmem:[%s1707 + $0x10] sm:$0xff]
        %v1711 = vld [vmem:[%s1707 + $0x18] sm:$0xff]
        %v1712 = vld [vmem:[%s1707 + $0x20] sm:$0xff]
        %v1713 = vld [vmem:[%s1707 + $0x28] sm:$0xff]
        %v1714 = vld [vmem:[%s1707 + $0x30] sm:$0xff]
        %v1715 = vld [vmem:[%s1707 + $0x38] sm:$0xff]
        %v1716 = vld [vmem:[%s1707 + $0x40] sm:$0xff]
        %v1717 = vld [vmem:[%s1707 + $0x48] sm:$0xff]
        %v1718 = vld [vmem:[%s1707 + $0x50] sm:$0xff]
        %v1719 = vld [vmem:[%s1707 + $0x58] sm:$0xff]
        %v1720 = vld [vmem:[%s1707 + $0x60] sm:$0xff]
        %v1721 = vld [vmem:[%s1707 + $0x68] sm:$0xff]
        %v1722 = vld [vmem:[%s1707 + $0x70] sm:$0xff]
        %v1723 = vld [vmem:[%s1707 + $0x78] sm:$0xff]
        %v1724 = vld [vmem:[%s1707 + $0x80] sm:$0xff]
        %v1725 = vld [vmem:[%s1707 + $0x88] sm:$0xff]
        %v1726 = vld [vmem:[%s1707 + $0x90] sm:$0xff]
        %v1727 = vld [vmem:[%s1707 + $0x98] sm:$0xff]
        %v1728 = vld [vmem:[%s1707 + $0xa0] sm:$0xff]
        %v1729 = vld [vmem:[%s1707 + $0xa8] sm:$0xff]
        %v1730 = vld [vmem:[%s1707 + $0xb0] sm:$0xff]
        %v1731 = vld [vmem:[%s1707 + $0xb8] sm:$0xff]
        %v1732 = vld [vmem:[%s1707 + $0xc0] sm:$0xff]
        %v1733 = vld [vmem:[%s1707 + $0xc8] sm:$0xff]
        %v1734 = vld [vmem:[%s1707 + $0xd0] sm:$0xff]
        %v1735 = vld [vmem:[%s1707 + $0xd8] sm:$0xff]
        %v1736 = vld [vmem:[%s1707 + $0xe0] sm:$0xff]
        %v1737 = vld [vmem:[%s1707 + $0xe8] sm:$0xff]
        %v1738 = vld [vmem:[%s1707 + $0xf0] sm:$0xff]
        %v1739 = vld [vmem:[%s1707 + $0xf8] sm:$0xff]
        %s1740 = scalar_lea.vmem %s664, 1
        %v1741 = vld [vmem:[%s1740] sm:$0x1]
        %v1743 = vlaneseq
        %v1744 = vshrl.u32 %v1743, 7
        %v1745 = vsub.s32 0, %v1744
        %v1746 = vrot.slane %v1741, %v1745
        %1748 = vmatprep.subr.mxu0 0.0
        %1749 = vmatpush1.msra.mxu0 %v1708
        %1750 = vmatprep.subr.mxu0 0.0
        %1751 = vmatpush1.msra.mxu0 %v1709
        %1752 = vmatprep.subr.mxu0 0.0
        %1753 = vmatpush1.msra.mxu0 %v1710
        %1754 = vmatprep.subr.mxu0 0.0
        %1755 = vmatpush1.msra.mxu0 %v1711
        %1756 = vmatprep.subr.mxu0 0.0
        %1757 = vmatpush1.msra.mxu0 %v1712
        %1758 = vmatprep.subr.mxu0 0.0
        %1759 = vmatpush1.msra.mxu0 %v1713
        %1760 = vmatprep.subr.mxu0 0.0
        %1761 = vmatpush1.msra.mxu0 %v1714
        %1762 = vmatprep.subr.mxu0 0.0
        %1763 = vmatpush1.msra.mxu0 %v1715
        %1764 = vmatprep.subr.mxu0 0.0
        %1765 = vmatpush1.msra.mxu0 %v1716
        %1766 = vmatprep.subr.mxu0 0.0
        %1767 = vmatpush1.msra.mxu0 %v1717
        %1768 = vmatprep.subr.mxu0 0.0
        %1769 = vmatpush1.msra.mxu0 %v1718
        %1770 = vmatprep.subr.mxu0 0.0
        %1771 = vmatpush1.msra.mxu0 %v1719
        %1772 = vmatprep.subr.mxu0 0.0
        %1773 = vmatpush1.msra.mxu0 %v1720
        %1774 = vmatprep.subr.mxu0 0.0
        %1775 = vmatpush1.msra.mxu0 %v1721
        %1776 = vmatprep.subr.mxu0 0.0
        %1777 = vmatpush1.msra.mxu0 %v1722
        %1778 = vmatprep.subr.mxu0 0.0
        %1779 = vmatpush1.msra.mxu0 %v1723
        %1780 = vmatprep.subr.mxu0 0.0
        %1781 = vmatpush1.msra.mxu0 %v1724
        %1782 = vmatprep.subr.mxu0 0.0
        %1783 = vmatpush1.msra.mxu0 %v1725
        %1784 = vmatprep.subr.mxu0 0.0
        %1785 = vmatpush1.msra.mxu0 %v1726
        %1786 = vmatprep.subr.mxu0 0.0
        %1787 = vmatpush1.msra.mxu0 %v1727
        %1788 = vmatprep.subr.mxu0 0.0
        %1789 = vmatpush1.msra.mxu0 %v1728
        %1790 = vmatprep.subr.mxu0 0.0
        %1791 = vmatpush1.msra.mxu0 %v1729
        %1792 = vmatprep.subr.mxu0 0.0
        %1793 = vmatpush1.msra.mxu0 %v1730
        %1794 = vmatprep.subr.mxu0 0.0
        %1795 = vmatpush1.msra.mxu0 %v1731
        %1796 = vmatprep.subr.mxu0 0.0
        %1797 = vmatpush1.msra.mxu0 %v1732
        %1798 = vmatprep.subr.mxu0 0.0
        %1799 = vmatpush1.msra.mxu0 %v1733
        %1800 = vmatprep.subr.mxu0 0.0
        %1801 = vmatpush1.msra.mxu0 %v1734
        %1802 = vmatprep.subr.mxu0 0.0
        %1803 = vmatpush1.msra.mxu0 %v1735
        %1804 = vmatprep.subr.mxu0 0.0
        %1805 = vmatpush1.msra.mxu0 %v1736
        %1806 = vmatprep.subr.mxu0 0.0
        %1807 = vmatpush1.msra.mxu0 %v1737
        %1808 = vmatprep.subr.mxu0 0.0
        %1809 = vmatpush1.msra.mxu0 %v1738
        %1810 = vmatprep.subr.mxu0 0.0
        %1811 = vmatpush1.msra.mxu0 %v1739
        %1812 = vmatprep.mubr.f32.mxu0 %v1706
        %1813 = vmatmul.mubr.f32.gmra.mrb[0].mxu0 %v1705
        %v1814 = vpop.f32.mrb[0].mxu0
        %v1815 = vadd.f32 %v1746, %v1814
        %v1816 = vpop.f32.mrb[0].mxu0
        %1817 = vdwg.mxu0
        %v1818 = vsub.f32 %v1217, %v1815
        %v1819 = vmax.f32 %v1818, 0.0
        %vm1820 = vcmp.ne.f32.partialorder %v1818, %v1818
        %v1821 = vadd.f32 %v1818, 0.0
        %v1822 = vand.u32 2147483647, %v1818
        %v1823 = vsub.f32 0.0, %v1822
        %v1824 = vmul.f32 %v1823, 1.442695
        %v1825 = vpow.pop %v1824
        %v1826 = vadd.f32 %v1825, 1.0
        %v1827 = vlog2.pop %v1826
        %v1828 = vmul.f32 %v1827, 0.6931472
        %v1829 = vmul.f32 -0.5, %v1825
        %v1830 = vadd.f32 %v1829, 1.0
        %v1831 = vmul.f32 %v1830, %v1825
        %v1832 = vand.u32 2147483647, %v1825
        %vm1833 = vcmp.lt.f32.partialorder %v1832, 0.0004427343
        %v1834 = vsel %vm1833, %v1831, %v1828
        %v1835 = vadd.f32 %v1819, %v1834
        %v1836 = vsel %vm1820, %v1821, %v1835
        %v1837 = vsub.f32 %v1217, %v1836
        %v1838 = vsub.f32 %v1837, %v1243
        %v1839 = vmax.f32 %v1838, 0.0
        %vm1840 = vcmp.ne.f32.partialorder %v1838, %v1838
        %v1841 = vadd.f32 %v1838, 0.0
        %v1842 = vand.u32 2147483647, %v1838
        %v1843 = vsub.f32 0.0, %v1842
        %v1844 = vmul.f32 %v1843, 1.442695
        %v1845 = vpow.pop %v1844
        %v1846 = vadd.f32 %v1845, 1.0
        %v1847 = vlog2.pop %v1846
        %v1848 = vmul.f32 %v1847, 0.6931472
        %v1849 = vmul.f32 -0.5, %v1845
        %v1850 = vadd.f32 %v1849, 1.0
        %v1851 = vmul.f32 %v1850, %v1845
        %v1852 = vand.u32 2147483647, %v1845
        %vm1853 = vcmp.lt.f32.partialorder %v1852, 0.0004427343
        %v1854 = vsel %vm1853, %v1851, %v1848
        %v1855 = vadd.f32 %v1839, %v1854
        %v1856 = vsel %vm1840, %v1841, %v1855
        %v1857 = vadd.f32 %v1243, %v1856
        %v1858 = vsel %vm1266, %v1815, %v1857
        %s1859 = scalar_lea.vmem %s637, 8 [#allocation13]
        %1860 = vst [vmem:[%s1859] sm:$0xff] %v1858
        %s1861 = sand.u32 %s319, 1
        %s1862 = scalar_lea.sflag [#allocation4], %s1861
        %s1863 = sand.u32 %s319, 1
        %s1864 = smul.addr %s1863, 16
        %s1865 = scalar_lea.vmem [#allocation13], %s1864
        // Predicated region
        $region89: #{tpu_custom_call.1} parent=63 // pred_check
          %p1866 = pneg %p329
        $region90: #{tpu_custom_call.1} parent=63 // pred_check_branch
          %1868 = sbr.rel (%p1866) target = $region92
        $region91: #{tpu_custom_call.1} parent=63 // pred_region
          %s1869 = smul.u32 2, %s35
          %s1871 = ssub.s32 256, 256
          %1872 = vsyncadd %s1862, %s1871
          %s1873 = smul.addr %s1869, 128
          %s1874 = scalar_lea.hbm %s11, %s1873
          %s1875 = sshll.u32 %s1865, 4
          %s1876 = int_to_ptr.vmem [resolvable:$true] %s1875
          %1881 = dma.vmem_to_hbm [thread:$0]  %s1876, 256, %s1874, %s1862, 128, 128, 8
        $region92: #{tpu_custom_call.1} parent=63 // pred_fallthru
          _
      $region64: #{tpu_custom_call.1} parent=5 // pred_fallthru
        _
      %p1882 = scmp.le.s32.totalorder 2, %s30
      // Predicated region
      $region93: #{tpu_custom_call.1} parent=5 // pred_check
        %p1883 = pneg %p1882
      $region94: #{tpu_custom_call.1} parent=5 // pred_check_branch
        %1885 = sbr.rel (%p1883) target = $region96
      $region95: #{tpu_custom_call.1} parent=5 // pred_region
        %s1886 = ssub.s32 %s30, 2
        // Predicated region
        $region97: #{tpu_custom_call.1} parent=95 // pred_check
          %p1887 = pneg %p335
        $region98: #{tpu_custom_call.1} parent=95 // pred_check_branch
          %1889 = sbr.rel (%p1887) target = $region100
        $region99: #{tpu_custom_call.1} parent=95 // pred_region
          %s1890 = sand.u32 %s320, 1
          %s1891 = scalar_lea.sflag [#allocation4], %s1890
          %s1892 = sand.u32 %s320, 1
          %s1893 = smul.addr %s1892, 16
          %s1894 = scalar_lea.vmem [#allocation13], %s1893
          %1895 = dma.done %s1891, 256
        $region100: #{tpu_custom_call.1} parent=95 // pred_fallthru
          _
      $region96: #{tpu_custom_call.1} parent=5 // pred_fallthru
        _
    $region6: #{tpu_custom_call.1} parent=1 // loop_footer
      %s34 = sadd.s32 1, %s30
    $region7: #{tpu_custom_call.1} parent=1 // loop_footer_branch
      %29 = sbr.rel target = $region3
    $region8: #{tpu_custom_call.1} parent=1 // loop_exit
      _
    %1896 = vsyncpa [#allocation3], 1
    %s1897 = scalar_lea.sflag [#allocation3], 1
    %1898 = vsyncpa %s1897, 1
    %1899 = vsyncpa [#allocation6], 1
    %s1900 = scalar_lea.sflag [#allocation6], 1
    %1901 = vsyncpa %s1900, 1
    %1902 = vsyncpa [#allocation9], 1
    %s1903 = scalar_lea.sflag [#allocation9], 1
    %1904 = vsyncpa %s1903, 1
    %1905 = vsyncpa [#allocation12], 1
    %s1906 = scalar_lea.sflag [#allocation12], 1
    %1907 = vsyncpa %s1906, 1
    %1908 = vsyncpa [#allocation4], 1
    %s1909 = scalar_lea.sflag [#allocation4], 1
    %1910 = vsyncpa %s1909, 1

</llo_original>
